<compile_context>
chip_gen: v7x
topology: tpu7x:2x2x1
jax: 0.10.0
libtpu: 0.0.40
codegen_flags: <defaults>
</compile_context>

<pallas_src>
import math
import functools

import jax
import jax.numpy as jnp
from jax.experimental import pallas as pl
from jax.experimental.pallas import tpu as pltpu


def mha_flash_kernel(xq_ref, xkv_ref, wq_ref, wk_ref, wv_ref, bq_ref, bk_ref, bv_ref,
                     wo_ref, bo_ref, o_ref,
                     q_sc, m_sc, l_sc, acc_sc, out_sc, *, scale):
    """Grid axes: (batch, q_tile, head, kv_tile).

    Ref views (leading size-1 dims squeezed by the BlockSpecs):
      xq_ref  : (Tq,  Din)   query-row tile of x
      xkv_ref : (Tkv, Din)   key/value-row tile of x
      wq/wk/wv_ref : (Din, hd)   per-head projection weights (head picked by BlockSpec)
      bq/bk/bv_ref : (1, hd)
      wo_ref  : (hd, E)      per-head slab of the output projection
      bo_ref  : (1, E)
      o_ref   : (Tq, E)
    Scratch:
      q_sc   (Tq, hd)  input dtype   scaled Q for the current (q_tile, head)
      m_sc   (Tq, 1)   f32           running row max
      l_sc   (Tq, 1)   f32           running row sum
      acc_sc (Tq, hd)  f32           running softmax@V accumulator
      out_sc (Tq, E)   f32           output-projection accumulator over heads
    """
    h = pl.program_id(2)
    ki = pl.program_id(3)
    num_heads = pl.num_programs(2)
    num_kv = pl.num_programs(3)

    @pl.when(jnp.logical_and(h == 0, ki == 0))
    def _():
        out_sc[...] = jnp.zeros(out_sc.shape, jnp.float32)

    @pl.when(ki == 0)
    def _():
        # Per-head Q projection for this query tile: f32 MXU accumulation, then cast
        # back to the input dtype so the QK^T matmul uses the fast bf16-in/f32-acc path.
        q = jnp.dot(xq_ref[...], wq_ref[...], preferred_element_type=jnp.float32)
        q = (q + bq_ref[...]) * scale
        q_sc[...] = q.astype(q_sc.dtype)
        m_sc[...] = jnp.full(m_sc.shape, -jnp.inf, jnp.float32)
        l_sc[...] = jnp.zeros(l_sc.shape, jnp.float32)
        acc_sc[...] = jnp.zeros(acc_sc.shape, jnp.float32)

    # K / V projection for the current KV tile and head (f32 acc, operands native dtype).
    xkv = xkv_ref[...]
    k = (jnp.dot(xkv, wk_ref[...], preferred_element_type=jnp.float32)
         + bk_ref[...]).astype(xkv.dtype)                                   # (Tkv, hd)
    v = (jnp.dot(xkv, wv_ref[...], preferred_element_type=jnp.float32)
         + bv_ref[...]).astype(xkv.dtype)                                   # (Tkv, hd)

    # Scaled dot-product logits: contract over head_dim, no explicit transpose.
    s = jax.lax.dot_general(q_sc[...], k, (((1,), (1,)), ((), ())),
                            preferred_element_type=jnp.float32)             # (Tq, Tkv)

    # Online softmax update (statistics kept in f32).
    m_prev = m_sc[...]
    m_new = jnp.maximum(m_prev, jnp.max(s, axis=-1, keepdims=True))
    alpha = jnp.exp(m_prev - m_new)
    p = jnp.exp(s - m_new)                                                  # (Tq, Tkv) f32
    l_sc[...] = alpha * l_sc[...] + jnp.sum(p, axis=-1, keepdims=True)
    acc_sc[...] = alpha * acc_sc[...] + jnp.dot(
        p.astype(v.dtype), v, preferred_element_type=jnp.float32)           # (Tq, hd)
    m_sc[...] = m_new

    @pl.when(ki == num_kv - 1)
    def _():
        # Deferred normalization (EUP reciprocal) + per-head slab of the output proj.
        vals = acc_sc[...] * pl.reciprocal(l_sc[...], approx=True)          # (Tq, hd) f32
        out_sc[...] += jnp.dot(vals.astype(wo_ref.dtype), wo_ref[...],
                               preferred_element_type=jnp.float32)          # (Tq, E)

    @pl.when(jnp.logical_and(h == num_heads - 1, ki == num_kv - 1))
    def _():
        o_ref[...] = (out_sc[...] + bo_ref[...]).astype(o_ref.dtype)


def multihead_attention(x, wqkv, bqkv, wo, bo, *, num_heads, tq=None, tkv=None):
    """Forward pass of the MultiheadAttention module (mask=None).

    x    : (B, S, Din)
    wqkv : (Din, 3E) = qkv_proj.weight.T  (per-head interleaved columns, see header note)
    bqkv : (3E,)
    wo   : (E, E)    = o_proj.weight.T
    bo   : (E,)
    Returns (B, S, E).
    """
    B, S, Din = x.shape
    three_e = wqkv.shape[1]
    E = three_e // 3
    H = num_heads
    hd = E // H

    # Tile sizes: bounded working set independent of S.  v5e/v6e (128 MiB VMEM) can take
    # larger tiles (e.g. 512); these defaults stay comfortably inside v7x's 64 MiB.
    if tq is None:
        tq = min(S, 256)
    if tkv is None:
        tkv = min(S, 256)
    assert S % tq == 0 and S % tkv == 0, "seq len must be divisible by the tile sizes"
    assert (tq % 8 == 0) or (tq == S)
    assert (tkv % 8 == 0) or (tkv == S)

    # Head-major weight layouts so BlockSpecs hand the kernel full-width per-head slabs
    # (no narrow lane slices inside the kernel).  Pure layout plumbing, done in XLA.
    w3 = wqkv.reshape(Din, H, 3, hd)
    wq = jnp.transpose(w3[:, :, 0, :], (1, 0, 2))     # (H, Din, hd)
    wk = jnp.transpose(w3[:, :, 1, :], (1, 0, 2))     # (H, Din, hd)
    wv = jnp.transpose(w3[:, :, 2, :], (1, 0, 2))     # (H, Din, hd)
    b3 = bqkv.reshape(H, 3, hd)
    bq = b3[:, 0, :].reshape(H, 1, hd)
    bk = b3[:, 1, :].reshape(H, 1, hd)
    bv = b3[:, 2, :].reshape(H, 1, hd)
    wo3 = wo.reshape(H, hd, E)                        # row index of wo is h*hd + d
    bo2 = bo.reshape(1, E)

    grid = (B, S // tq, H, S // tkv)
    kernel = functools.partial(mha_flash_kernel, scale=1.0 / math.sqrt(hd))

    # Note: the constant-index weight blocks could additionally be single-buffered
    # (pipeline_mode=pl.Buffered) to save VMEM at large model sizes.
    return pl.pallas_call(
        kernel,
        out_shape=jax.ShapeDtypeStruct((B, S, E), x.dtype),
        grid_spec=pltpu.PrefetchScalarGridSpec(
            num_scalar_prefetch=0,
            grid=grid,
            in_specs=[
                pl.BlockSpec((pl.Squeezed(), tq, Din), lambda b, qi, h, ki: (b, qi, 0)),
                pl.BlockSpec((pl.Squeezed(), tkv, Din), lambda b, qi, h, ki: (b, ki, 0)),
                pl.BlockSpec((pl.Squeezed(), Din, hd), lambda b, qi, h, ki: (h, 0, 0)),
                pl.BlockSpec((pl.Squeezed(), Din, hd), lambda b, qi, h, ki: (h, 0, 0)),
                pl.BlockSpec((pl.Squeezed(), Din, hd), lambda b, qi, h, ki: (h, 0, 0)),
                pl.BlockSpec((pl.Squeezed(), 1, hd), lambda b, qi, h, ki: (h, 0, 0)),
                pl.BlockSpec((pl.Squeezed(), 1, hd), lambda b, qi, h, ki: (h, 0, 0)),
                pl.BlockSpec((pl.Squeezed(), 1, hd), lambda b, qi, h, ki: (h, 0, 0)),
                pl.BlockSpec((pl.Squeezed(), hd, E), lambda b, qi, h, ki: (h, 0, 0)),
                pl.BlockSpec((1, E), lambda b, qi, h, ki: (0, 0)),
            ],
            out_specs=pl.BlockSpec((pl.Squeezed(), tq, E), lambda b, qi, h, ki: (b, qi, 0)),
            scratch_shapes=[
                pltpu.VMEM((tq, hd), x.dtype),       # q_sc (scaled Q, input dtype)
                pltpu.VMEM((tq, 1), jnp.float32),    # m_sc
                pltpu.VMEM((tq, 1), jnp.float32),    # l_sc
                pltpu.VMEM((tq, hd), jnp.float32),   # acc_sc
                pltpu.VMEM((tq, E), jnp.float32),    # out_sc
            ],
        ),
        compiler_params=pltpu.CompilerParams(
            # batch & q-tile axes are independent -> parallel (feeds both v7x TCs);
            # head & kv axes carry accumulator state -> arbitrary.
            dimension_semantics=("parallel", "parallel", "arbitrary", "arbitrary"),
            vmem_limit_bytes=32 * 1024 * 1024,
        ),
    )(x, x, wq, wk, wv, bq, bk, bv, wo3, bo2)


def multihead_attention_ref(x, wqkv, bqkv, wo, bo, *, num_heads):
    """Pure-JAX reference mirroring the PyTorch module exactly."""
    B, S, Din = x.shape
    E = wqkv.shape[1] // 3
    hd = E // num_heads
    qkv = x @ wqkv + bqkv                                             # (B, S, 3E)
    qkv = qkv.reshape(B, S, num_heads, 3 * hd).transpose(0, 2, 1, 3)  # (B, H, S, 3hd)
    q, k, v = jnp.split(qkv, 3, axis=-1)
    logits = jnp.einsum("bhqd,bhkd->bhqk", q, k) / math.sqrt(hd)
    attn = jax.nn.softmax(logits, axis=-1)
    vals = jnp.einsum("bhqk,bhkd->bhqd", attn, v)
    vals = vals.transpose(0, 2, 1, 3).reshape(B, S, E)
    return vals @ wo + bo


if __name__ == "__main__":
    # Module config: input_dim=32, embed_dim=32, num_heads=4 (small, per the forward).
    B, S = 2, 8
    input_dim, embed_dim, num_heads = 32, 32, 4

    key = jax.random.PRNGKey(0)
    kx, kx2, kqkv, kbq, ko, kbo = jax.random.split(key, 6)

    bound_qkv = math.sqrt(6.0 / (input_dim + 3 * embed_dim))
    wqkv = jax.random.uniform(kqkv, (input_dim, 3 * embed_dim), jnp.float32,
                              minval=-bound_qkv, maxval=bound_qkv)
    bqkv = 0.1 * jax.random.normal(kbq, (3 * embed_dim,), jnp.float32)

    bound_o = math.sqrt(6.0 / (embed_dim + embed_dim))
    wo = jax.random.uniform(ko, (embed_dim, embed_dim), jnp.float32,
                            minval=-bound_o, maxval=bound_o)
    bo = 0.1 * jax.random.normal(kbo, (embed_dim,), jnp.float32)

    x = jax.random.normal(kx, (B, S, input_dim), jnp.float32)

    out = multihead_attention(x, wqkv, bqkv, wo, bo, num_heads=num_heads)
    out = jax.block_until_ready(out)
    ref = multihead_attention_ref(x, wqkv, bqkv, wo, bo, num_heads=num_heads)
    assert out.shape == (B, S, embed_dim)
    assert jnp.allclose(out, ref, atol=2e-3, rtol=2e-3), "mismatch vs reference (S=8)"

    # Second (still small) case with several Q and KV tiles to exercise the
    # online-softmax / cross-tile accumulation path.
    S2 = 64
    x2 = jax.random.normal(kx2, (B, S2, input_dim), jnp.float32)
    out2 = multihead_attention(x2, wqkv, bqkv, wo, bo, num_heads=num_heads, tq=32, tkv=16)
    out2 = jax.block_until_ready(out2)
    ref2 = multihead_attention_ref(x2, wqkv, bqkv, wo, bo, num_heads=num_heads)
    assert jnp.allclose(out2, ref2, atol=2e-3, rtol=2e-3), "mismatch vs reference (S=64)"

    print("KERNEL_OK")
</pallas_src>

<mosaic_0001>
module attributes {stable_mosaic.version = 11 : i64} {
  func.func @mha_flash_kernel(%arg0: i32, %arg1: i32, %arg2: i32, %arg3: i32, %arg4: memref<1x8x32xf32, #tpu.memory_space<vmem>>, %arg5: memref<1x8x32xf32, #tpu.memory_space<vmem>>, %arg6: memref<1x32x8xf32, #tpu.memory_space<vmem>>, %arg7: memref<1x32x8xf32, #tpu.memory_space<vmem>>, %arg8: memref<1x32x8xf32, #tpu.memory_space<vmem>>, %arg9: memref<1x1x8xf32, #tpu.memory_space<vmem>>, %arg10: memref<1x1x8xf32, #tpu.memory_space<vmem>>, %arg11: memref<1x1x8xf32, #tpu.memory_space<vmem>>, %arg12: memref<1x8x32xf32, #tpu.memory_space<vmem>>, %arg13: memref<1x32xf32, #tpu.memory_space<vmem>>, %arg14: memref<1x8x32xf32, #tpu.memory_space<vmem>>, %arg15: memref<8x8xf32, #tpu.memory_space<vmem>>, %arg16: memref<8x1xf32, #tpu.memory_space<vmem>>, %arg17: memref<8x1xf32, #tpu.memory_space<vmem>>, %arg18: memref<8x8xf32, #tpu.memory_space<vmem>>, %arg19: memref<8x32xf32, #tpu.memory_space<vmem>>) attributes {dimension_semantics = [#tpu.dimension_semantics<parallel>, #tpu.dimension_semantics<parallel>, #tpu.dimension_semantics<arbitrary>, #tpu.dimension_semantics<arbitrary>], iteration_bounds = array<i64: 2, 1, 4, 1>, scalar_prefetch = 0 : i64, scratch_operands = 5 : i64, tpu.core_type = #tpu.core_type<tc>, window_params = [{transform_indices = @transform_0, window_bounds = array<i64: 1, 8, 32>}, {transform_indices = @transform_1, window_bounds = array<i64: 1, 8, 32>}, {transform_indices = @transform_2, window_bounds = array<i64: 1, 32, 8>}, {transform_indices = @transform_3, window_bounds = array<i64: 1, 32, 8>}, {transform_indices = @transform_4, window_bounds = array<i64: 1, 32, 8>}, {transform_indices = @transform_5, window_bounds = array<i64: 1, 1, 8>}, {transform_indices = @transform_6, window_bounds = array<i64: 1, 1, 8>}, {transform_indices = @transform_7, window_bounds = array<i64: 1, 1, 8>}, {transform_indices = @transform_8, window_bounds = array<i64: 1, 8, 32>}, {pipeline_mode = #tpu.pipeline_mode<synchronous>, transform_indices = @transform_9, window_bounds = array<i64: 1, 32>}, {transform_indices = @transform_10, window_bounds = array<i64: 1, 8, 32>}]} {
    %c0_i32 = arith.constant 0 : i32
    %0 = arith.cmpi eq, %arg2, %c0_i32 : i32
    %c0_i32_0 = arith.constant 0 : i32
    %1 = arith.cmpi eq, %arg3, %c0_i32_0 : i32
    %2 = arith.andi %0, %1 : i1
    %3 = arith.extui %2 : i1 to i32
    %c0_i32_1 = arith.constant 0 : i32
    %4 = arith.cmpi ne, %3, %c0_i32_1 : i32
    scf.if %4 {
      %cst_41 = arith.constant 0.000000e+00 : f32
      %56 = vector.broadcast %cst_41 : f32 to vector<8x32xf32>
      %c0_42 = arith.constant 0 : index
      %c0_43 = arith.constant 0 : index
      %57 = vector.load %arg19[%c0_42, %c0_43] : memref<8x32xf32, #tpu.memory_space<vmem>>, vector<8x32xf32>
      tpu.vector_store %arg19[%c0_42, %c0_43], %56 {strides = array<i32>} : memref<8x32xf32, #tpu.memory_space<vmem>>, vector<8x32xf32>,
    } else {
    }
    %c0_i32_2 = arith.constant 0 : i32
    %5 = arith.cmpi eq, %arg3, %c0_i32_2 : i32
    %6 = arith.extui %5 : i1 to i32
    %c0_i32_3 = arith.constant 0 : i32
    %7 = arith.cmpi ne, %6, %c0_i32_3 : i32
    scf.if %7 {
      %c0_41 = arith.constant 0 : index
      %c0_42 = arith.constant 0 : index
      %c0_43 = arith.constant 0 : index
      %56 = vector.load %arg4[%c0_41, %c0_42, %c0_43] : memref<1x8x32xf32, #tpu.memory_space<vmem>>, vector<1x8x32xf32>
      %57 = vector.shape_cast %56 : vector<1x8x32xf32> to vector<8x32xf32>
      %c0_44 = arith.constant 0 : index
      %c0_45 = arith.constant 0 : index
      %c0_46 = arith.constant 0 : index
      %58 = vector.load %arg6[%c0_44, %c0_45, %c0_46] : memref<1x32x8xf32, #tpu.memory_space<vmem>>, vector<1x32x8xf32>
      %59 = vector.shape_cast %58 : vector<1x32x8xf32> to vector<32x8xf32>
      %cst_47 = arith.constant dense<0.000000e+00> : vector<8x8xf32>
      %60 = tpu.matmul %57, %59, %cst_47 {dimension_numbers = #tpu.dot_dimension_numbers<[1], [0], [0], [1], [0, 0, 1, 1], [], []>} : vector<8x32xf32>, vector<32x8xf32>, vector<8x8xf32> -> vector<8x8xf32>
      %c0_48 = arith.constant 0 : index
      %c0_49 = arith.constant 0 : index
      %c0_50 = arith.constant 0 : index
      %61 = vector.load %arg9[%c0_48, %c0_49, %c0_50] : memref<1x1x8xf32, #tpu.memory_space<vmem>>, vector<1x1x8xf32>
      %62 = vector.shape_cast %61 : vector<1x1x8xf32> to vector<1x8xf32>
      %63 = vector.broadcast %62 : vector<1x8xf32> to vector<8x8xf32>
      %64 = arith.addf %60, %63 : vector<8x8xf32>
      %cst_51 = arith.constant 0.353553385 : f32
      %65 = vector.broadcast %cst_51 : f32 to vector<8x8xf32>
      %66 = arith.mulf %64, %65 : vector<8x8xf32>
      %c0_52 = arith.constant 0 : index
      %c0_53 = arith.constant 0 : index
      %67 = vector.load %arg15[%c0_52, %c0_53] : memref<8x8xf32, #tpu.memory_space<vmem>>, vector<8x8xf32>
      tpu.vector_store %arg15[%c0_52, %c0_53], %66 {strides = array<i32>} : memref<8x8xf32, #tpu.memory_space<vmem>>, vector<8x8xf32>,
      %cst_54 = arith.constant 0xFF800000 : f32
      %68 = vector.broadcast %cst_54 : f32 to vector<8x1xf32>
      %c0_55 = arith.constant 0 : index
      %c0_56 = arith.constant 0 : index
      %69 = vector.load %arg16[%c0_55, %c0_56] : memref<8x1xf32, #tpu.memory_space<vmem>>, vector<8x1xf32>
      tpu.vector_store %arg16[%c0_55, %c0_56], %68 {strides = array<i32>} : memref<8x1xf32, #tpu.memory_space<vmem>>, vector<8x1xf32>,
      %cst_57 = arith.constant 0.000000e+00 : f32
      %70 = vector.broadcast %cst_57 : f32 to vector<8x1xf32>
      %c0_58 = arith.constant 0 : index
      %c0_59 = arith.constant 0 : index
      %71 = vector.load %arg17[%c0_58, %c0_59] : memref<8x1xf32, #tpu.memory_space<vmem>>, vector<8x1xf32>
      tpu.vector_store %arg17[%c0_58, %c0_59], %70 {strides = array<i32>} : memref<8x1xf32, #tpu.memory_space<vmem>>, vector<8x1xf32>,
      %cst_60 = arith.constant 0.000000e+00 : f32
      %72 = vector.broadcast %cst_60 : f32 to vector<8x8xf32>
      %c0_61 = arith.constant 0 : index
      %c0_62 = arith.constant 0 : index
      %73 = vector.load %arg18[%c0_61, %c0_62] : memref<8x8xf32, #tpu.memory_space<vmem>>, vector<8x8xf32>
      tpu.vector_store %arg18[%c0_61, %c0_62], %72 {strides = array<i32>} : memref<8x8xf32, #tpu.memory_space<vmem>>, vector<8x8xf32>,
    } else {
    }
    %c0 = arith.constant 0 : index
    %c0_4 = arith.constant 0 : index
    %c0_5 = arith.constant 0 : index
    %8 = vector.load %arg5[%c0, %c0_4, %c0_5] : memref<1x8x32xf32, #tpu.memory_space<vmem>>, vector<1x8x32xf32>
    %9 = vector.shape_cast %8 : vector<1x8x32xf32> to vector<8x32xf32>
    %c0_6 = arith.constant 0 : index
    %c0_7 = arith.constant 0 : index
    %c0_8 = arith.constant 0 : index
    %10 = vector.load %arg7[%c0_6, %c0_7, %c0_8] : memref<1x32x8xf32, #tpu.memory_space<vmem>>, vector<1x32x8xf32>
    %11 = vector.shape_cast %10 : vector<1x32x8xf32> to vector<32x8xf32>
    %cst = arith.constant dense<0.000000e+00> : vector<8x8xf32>
    %12 = tpu.matmul %9, %11, %cst {dimension_numbers = #tpu.dot_dimension_numbers<[1], [0], [0], [1], [0, 0, 1, 1], [], []>} : vector<8x32xf32>, vector<32x8xf32>, vector<8x8xf32> -> vector<8x8xf32>
    %c0_9 = arith.constant 0 : index
    %c0_10 = arith.constant 0 : index
    %c0_11 = arith.constant 0 : index
    %13 = vector.load %arg10[%c0_9, %c0_10, %c0_11] : memref<1x1x8xf32, #tpu.memory_space<vmem>>, vector<1x1x8xf32>
    %14 = vector.shape_cast %13 : vector<1x1x8xf32> to vector<1x8xf32>
    %15 = vector.broadcast %14 : vector<1x8xf32> to vector<8x8xf32>
    %16 = arith.addf %12, %15 : vector<8x8xf32>
    %c0_12 = arith.constant 0 : index
    %c0_13 = arith.constant 0 : index
    %c0_14 = arith.constant 0 : index
    %17 = vector.load %arg8[%c0_12, %c0_13, %c0_14] : memref<1x32x8xf32, #tpu.memory_space<vmem>>, vector<1x32x8xf32>
    %18 = vector.shape_cast %17 : vector<1x32x8xf32> to vector<32x8xf32>
    %cst_15 = arith.constant dense<0.000000e+00> : vector<8x8xf32>
    %19 = tpu.matmul %9, %18, %cst_15 {dimension_numbers = #tpu.dot_dimension_numbers<[1], [0], [0], [1], [0, 0, 1, 1], [], []>} : vector<8x32xf32>, vector<32x8xf32>, vector<8x8xf32> -> vector<8x8xf32>
    %c0_16 = arith.constant 0 : index
    %c0_17 = arith.constant 0 : index
    %c0_18 = arith.constant 0 : index
    %20 = vector.load %arg11[%c0_16, %c0_17, %c0_18] : memref<1x1x8xf32, #tpu.memory_space<vmem>>, vector<1x1x8xf32>
    %21 = vector.shape_cast %20 : vector<1x1x8xf32> to vector<1x8xf32>
    %22 = vector.broadcast %21 : vector<1x8xf32> to vector<8x8xf32>
    %23 = arith.addf %19, %22 : vector<8x8xf32>
    %c0_19 = arith.constant 0 : index
    %c0_20 = arith.constant 0 : index
    %24 = vector.load %arg15[%c0_19, %c0_20] : memref<8x8xf32, #tpu.memory_space<vmem>>, vector<8x8xf32>
    %cst_21 = arith.constant dense<0.000000e+00> : vector<8x8xf32>
    %25 = tpu.matmul %24, %16, %cst_21 {dimension_numbers = #tpu.dot_dimension_numbers<[1], [1], [0], [0], [0, 0, 1, 0], [], []>} : vector<8x8xf32>, vector<8x8xf32>, vector<8x8xf32> -> vector<8x8xf32>
    %c0_22 = arith.constant 0 : index
    %c0_23 = arith.constant 0 : index
    %26 = vector.load %arg16[%c0_22, %c0_23] : memref<8x1xf32, #tpu.memory_space<vmem>>, vector<8x1xf32>
    %cst_24 = arith.constant dense<0xFF800000> : vector<8xf32>
    %27 = vector.multi_reduction <maximumf>, %25, %cst_24 [1] : vector<8x8xf32> to vector<8xf32>
    %28 = vector.shape_cast %27 : vector<8xf32> to vector<8x1xf32>
    %29 = arith.maximumf %26, %28 : vector<8x1xf32>
    %30 = arith.subf %26, %29 : vector<8x1xf32>
    %31 = math.exp %30 : vector<8x1xf32>
    %32 = vector.broadcast %29 : vector<8x1xf32> to vector<8x8xf32>
    %33 = arith.subf %25, %32 : vector<8x8xf32>
    %34 = math.exp %33 : vector<8x8xf32>
    %c0_25 = arith.constant 0 : index
    %c0_26 = arith.constant 0 : index
    %35 = vector.load %arg17[%c0_25, %c0_26] : memref<8x1xf32, #tpu.memory_space<vmem>>, vector<8x1xf32>
    %36 = arith.mulf %31, %35 : vector<8x1xf32>
    %cst_27 = arith.constant dense<0.000000e+00> : vector<8xf32>
    %37 = vector.multi_reduction <add>, %34, %cst_27 [1] : vector<8x8xf32> to vector<8xf32>
    %38 = vector.shape_cast %37 : vector<8xf32> to vector<8x1xf32>
    %39 = arith.addf %36, %38 : vector<8x1xf32>
    %c0_28 = arith.constant 0 : index
    %c0_29 = arith.constant 0 : index
    %40 = vector.load %arg17[%c0_28, %c0_29] : memref<8x1xf32, #tpu.memory_space<vmem>>, vector<8x1xf32>
    tpu.vector_store %arg17[%c0_28, %c0_29], %39 {strides = array<i32>} : memref<8x1xf32, #tpu.memory_space<vmem>>, vector<8x1xf32>,
    %c0_30 = arith.constant 0 : index
    %c0_31 = arith.constant 0 : index
    %41 = vector.load %arg18[%c0_30, %c0_31] : memref<8x8xf32, #tpu.memory_space<vmem>>, vector<8x8xf32>
    %42 = vector.broadcast %31 : vector<8x1xf32> to vector<8x8xf32>
    %43 = arith.mulf %42, %41 : vector<8x8xf32>
    %cst_32 = arith.constant dense<0.000000e+00> : vector<8x8xf32>
    %44 = tpu.matmul %34, %23, %cst_32 {dimension_numbers = #tpu.dot_dimension_numbers<[1], [0], [0], [1], [0, 0, 1, 1], [], []>} : vector<8x8xf32>, vector<8x8xf32>, vector<8x8xf32> -> vector<8x8xf32>
    %45 = arith.addf %43, %44 : vector<8x8xf32>
    %c0_33 = arith.constant 0 : index
    %c0_34 = arith.constant 0 : index
    %46 = vector.load %arg18[%c0_33, %c0_34] : memref<8x8xf32, #tpu.memory_space<vmem>>, vector<8x8xf32>
    tpu.vector_store %arg18[%c0_33, %c0_34], %45 {strides = array<i32>} : memref<8x8xf32, #tpu.memory_space<vmem>>, vector<8x8xf32>,
    %c0_35 = arith.constant 0 : index
    %c0_36 = arith.constant 0 : index
    %47 = vector.load %arg16[%c0_35, %c0_36] : memref<8x1xf32, #tpu.memory_space<vmem>>, vector<8x1xf32>
    tpu.vector_store %arg16[%c0_35, %c0_36], %29 {strides = array<i32>} : memref<8x1xf32, #tpu.memory_space<vmem>>, vector<8x1xf32>,
    %c0_i32_37 = arith.constant 0 : i32
    %48 = arith.cmpi eq, %arg3, %c0_i32_37 : i32
    %49 = arith.extui %48 : i1 to i32
    %c0_i32_38 = arith.constant 0 : i32
    %50 = arith.cmpi ne, %49, %c0_i32_38 : i32
    scf.if %50 {
      %c0_41 = arith.constant 0 : index
      %c0_42 = arith.constant 0 : index
      %56 = vector.load %arg18[%c0_41, %c0_42] : memref<8x8xf32, #tpu.memory_space<vmem>>, vector<8x8xf32>
      %c0_43 = arith.constant 0 : index
      %c0_44 = arith.constant 0 : index
      %57 = vector.load %arg17[%c0_43, %c0_44] : memref<8x1xf32, #tpu.memory_space<vmem>>, vector<8x1xf32>
      %58 = tpu.reciprocal %57 {approx = true} : vector<8x1xf32> -> vector<8x1xf32>
      %59 = vector.broadcast %58 : vector<8x1xf32> to vector<8x8xf32>
      %60 = arith.mulf %56, %59 : vector<8x8xf32>
      %c0_45 = arith.constant 0 : index
      %c0_46 = arith.constant 0 : index
      %61 = vector.load %arg19[%c0_45, %c0_46] : memref<8x32xf32, #tpu.memory_space<vmem>>, vector<8x32xf32>
      %c0_47 = arith.constant 0 : index
      %c0_48 = arith.constant 0 : index
      %c0_49 = arith.constant 0 : index
      %62 = vector.load %arg12[%c0_47, %c0_48, %c0_49] : memref<1x8x32xf32, #tpu.memory_space<vmem>>, vector<1x8x32xf32>
      %63 = vector.shape_cast %62 : vector<1x8x32xf32> to vector<8x32xf32>
      %cst_50 = arith.constant dense<0.000000e+00> : vector<8x32xf32>
      %64 = tpu.matmul %60, %63, %cst_50 {dimension_numbers = #tpu.dot_dimension_numbers<[1], [0], [0], [1], [0, 0, 1, 1], [], []>} : vector<8x8xf32>, vector<8x32xf32>, vector<8x32xf32> -> vector<8x32xf32>
      %65 = arith.addf %61, %64 : vector<8x32xf32>
      %c0_51 = arith.constant 0 : index
      %c0_52 = arith.constant 0 : index
      %66 = vector.load %arg19[%c0_51, %c0_52] : memref<8x32xf32, #tpu.memory_space<vmem>>, vector<8x32xf32>
      tpu.vector_store %arg19[%c0_51, %c0_52], %65 {strides = array<i32>} : memref<8x32xf32, #tpu.memory_space<vmem>>, vector<8x32xf32>,
    } else {
    }
    %c3_i32 = arith.constant 3 : i32
    %51 = arith.cmpi eq, %arg2, %c3_i32 : i32
    %c0_i32_39 = arith.constant 0 : i32
    %52 = arith.cmpi eq, %arg3, %c0_i32_39 : i32
    %53 = arith.andi %51, %52 : i1
    %54 = arith.extui %53 : i1 to i32
    %c0_i32_40 = arith.constant 0 : i32
    %55 = arith.cmpi ne, %54, %c0_i32_40 : i32
    scf.if %55 {
      %c0_41 = arith.constant 0 : index
      %c0_42 = arith.constant 0 : index
      %56 = vector.load %arg19[%c0_41, %c0_42] : memref<8x32xf32, #tpu.memory_space<vmem>>, vector<8x32xf32>
      %c0_43 = arith.constant 0 : index
      %c0_44 = arith.constant 0 : index
      %57 = vector.load %arg13[%c0_43, %c0_44] : memref<1x32xf32, #tpu.memory_space<vmem>>, vector<1x32xf32>
      %58 = vector.broadcast %57 : vector<1x32xf32> to vector<8x32xf32>
      %59 = arith.addf %56, %58 : vector<8x32xf32>
      %c0_45 = arith.constant 0 : index
      %c0_46 = arith.constant 0 : index
      %c0_47 = arith.constant 0 : index
      %60 = vector.load %arg14[%c0_45, %c0_46, %c0_47] : memref<1x8x32xf32, #tpu.memory_space<vmem>>, vector<1x8x32xf32>
      %61 = vector.shape_cast %60 : vector<1x8x32xf32> to vector<8x32xf32>
      %62 = vector.shape_cast %59 : vector<8x32xf32> to vector<1x8x32xf32>
      tpu.vector_store %arg14[%c0_45, %c0_46, %c0_47], %62 {strides = array<i32>} : memref<1x8x32xf32, #tpu.memory_space<vmem>>, vector<1x8x32xf32>,
    } else {
    }
    return
  }
  func.func @transform_0(%arg0: i32, %arg1: i32, %arg2: i32, %arg3: i32) -> (i32, i32, i32) {
    %c0_i32 = arith.constant 0 : i32
    %c0_i32_0 = arith.constant 0 : i32
    return %arg0, %arg1, %c0_i32 : i32, i32, i32
  }
  func.func @transform_1(%arg0: i32, %arg1: i32, %arg2: i32, %arg3: i32) -> (i32, i32, i32) {
    %c0_i32 = arith.constant 0 : i32
    %c0_i32_0 = arith.constant 0 : i32
    return %arg0, %arg3, %c0_i32 : i32, i32, i32
  }
  func.func @transform_2(%arg0: i32, %arg1: i32, %arg2: i32, %arg3: i32) -> (i32, i32, i32) {
    %c0_i32 = arith.constant 0 : i32
    %c0_i32_0 = arith.constant 0 : i32
    %c0_i32_1 = arith.constant 0 : i32
    return %arg2, %c0_i32, %c0_i32_0 : i32, i32, i32
  }
  func.func @transform_3(%arg0: i32, %arg1: i32, %arg2: i32, %arg3: i32) -> (i32, i32, i32) {
    %c0_i32 = arith.constant 0 : i32
    %c0_i32_0 = arith.constant 0 : i32
    %c0_i32_1 = arith.constant 0 : i32
    return %arg2, %c0_i32, %c0_i32_0 : i32, i32, i32
  }
  func.func @transform_4(%arg0: i32, %arg1: i32, %arg2: i32, %arg3: i32) -> (i32, i32, i32) {
    %c0_i32 = arith.constant 0 : i32
    %c0_i32_0 = arith.constant 0 : i32
    %c0_i32_1 = arith.constant 0 : i32
    return %arg2, %c0_i32, %c0_i32_0 : i32, i32, i32
  }
  func.func @transform_5(%arg0: i32, %arg1: i32, %arg2: i32, %arg3: i32) -> (i32, i32, i32) {
    %c0_i32 = arith.constant 0 : i32
    %c0_i32_0 = arith.constant 0 : i32
    %c0_i32_1 = arith.constant 0 : i32
    return %arg2, %c0_i32, %c0_i32_0 : i32, i32, i32
  }
  func.func @transform_6(%arg0: i32, %arg1: i32, %arg2: i32, %arg3: i32) -> (i32, i32, i32) {
    %c0_i32 = arith.constant 0 : i32
    %c0_i32_0 = arith.constant 0 : i32
    %c0_i32_1 = arith.constant 0 : i32
    return %arg2, %c0_i32, %c0_i32_0 : i32, i32, i32
  }
  func.func @transform_7(%arg0: i32, %arg1: i32, %arg2: i32, %arg3: i32) -> (i32, i32, i32) {
    %c0_i32 = arith.constant 0 : i32
    %c0_i32_0 = arith.constant 0 : i32
    %c0_i32_1 = arith.constant 0 : i32
    return %arg2, %c0_i32, %c0_i32_0 : i32, i32, i32
  }
  func.func @transform_8(%arg0: i32, %arg1: i32, %arg2: i32, %arg3: i32) -> (i32, i32, i32) {
    %c0_i32 = arith.constant 0 : i32
    %c0_i32_0 = arith.constant 0 : i32
    %c0_i32_1 = arith.constant 0 : i32
    return %arg2, %c0_i32, %c0_i32_0 : i32, i32, i32
  }
  func.func @transform_9(%arg0: i32, %arg1: i32, %arg2: i32, %arg3: i32) -> (i32, i32) {
    %c0_i32 = arith.constant 0 : i32
    %c0_i32_0 = arith.constant 0 : i32
    %c0_i32_1 = arith.constant 0 : i32
    return %c0_i32, %c0_i32_0 : i32, i32
  }
  func.func @transform_10(%arg0: i32, %arg1: i32, %arg2: i32, %arg3: i32) -> (i32, i32, i32) {
    %c0_i32 = arith.constant 0 : i32
    %c0_i32_0 = arith.constant 0 : i32
    return %arg0, %arg1, %c0_i32 : i32, i32, i32
  }
}

</mosaic_0001>

<llo_original>
// kernel: tpu_custom_call.1
$region0: #{tpu_custom_call.1}
  #allocation0 [shape = 'u32[]', space=smem, size = 0x4, offset = 0x4, fixed_abs, tag = 'smem constant byte address 0x4 - core index']
  #allocation1 [shape = 'u32[144,128]{1,0:T(1,128)}', space=vmem, size = 0x12000, scoped, tag = 'internal scratch']
  #allocation2 [shape = 'f32[8,8]{1,0:T(8,128)}', space=vmem, size = 0x1000, scoped, tag = 'scratch operand']
  #allocation3 [shape = 'f32[8,1]{1,0:T(8,128)}', space=vmem, size = 0x1000, scoped, tag = 'scratch operand']
  #allocation4 [shape = 'f32[8,1]{1,0:T(8,128)}', space=vmem, size = 0x1000, scoped, tag = 'scratch operand']
  #allocation5 [shape = 'f32[8,8]{1,0:T(8,128)}', space=vmem, size = 0x1000, scoped, tag = 'scratch operand']
  #allocation6 [shape = 'f32[8,32]{1,0:T(8,128)}', space=vmem, size = 0x1000, scoped, tag = 'scratch operand']
  %s0 = inlined_call_operand.vmem [shape: f32[2,8,32], index: 0, kind: input, shape index: {}]
  %s1 = inlined_call_operand.vmem [shape: f32[2,8,32], index: 1, kind: input, shape index: {}]
  %s2 = inlined_call_operand.vmem [shape: f32[4,32,8], index: 2, kind: input, shape index: {}]
  %s3 = inlined_call_operand.vmem [shape: f32[4,32,8], index: 3, kind: input, shape index: {}]
  %s4 = inlined_call_operand.vmem [shape: f32[4,32,8], index: 4, kind: input, shape index: {}]
  %s5 = inlined_call_operand.vmem [shape: f32[4,1,8], index: 5, kind: input, shape index: {}]
  %s6 = inlined_call_operand.vmem [shape: f32[4,1,8], index: 6, kind: input, shape index: {}]
  %s7 = inlined_call_operand.vmem [shape: f32[4,1,8], index: 7, kind: input, shape index: {}]
  %s8 = inlined_call_operand.vmem [shape: f32[4,8,32], index: 8, kind: input, shape index: {}]
  %s9 = inlined_call_operand.vmem [shape: f32[1,32], index: 9, kind: input, shape index: {}]
  %s10 = inlined_call_operand.hbm [shape: f32[2,8,32], index: 10, kind: output, shape index: {}]
  %s11 = sld [smem:[#allocation0]]
  $region89: #{tpu_custom_call.1} parent=0
    _
  %s13 = ssub.s32 1, %s11
  %s14 = scalar_select 0, %s13, %s11
  $region1: #{tpu_custom_call.1} parent=0
    #allocation7 [shape = 'u8[8192]{0}', space=vmem, size = 0x2000, scoped, tag = 'output window, operand 0']
    #allocation8 [shape = 's32[2]{0}', space=sflag, size = 0x8, scoped, tag = 'scoped memory for tpu_custom_call.1']
    %15 = vsyncpa [#allocation8], 0
    %s16 = scalar_lea.sflag [#allocation8], 1
    %17 = vsyncpa %s16, 0
    loop: start=0, step=1, limit=10
    $region2: #{tpu_custom_call.1} parent=1 // loop_pre_header
      _
    $region3: #{tpu_custom_call.1} parent=1 // loop_header
      %s19 = sphi 0, %s23
      %p20 = scmp.ge.s32.totalorder %s19, 10
      %s26 = sphi 0, %s52
      %s27 = sphi 0, %s48
      %s28 = sphi 0, %s44
      %s29 = sphi 0, %s40
      %s30 = sphi 0, %s26
      %s31 = sphi 0, %s27
      %s32 = sphi 0, %s28
      %s33 = sphi 0, %s29
      %s34 = sphi 0, %s30
      %s35 = sphi 0, %s31
      %s36 = sphi 0, %s32
      %s37 = sphi 0, %s33
      %s57 = sphi 0, %s59
      %s60 = sphi 0, %s57
      %s61 = sphi 0, %s60
      %s77 = sphi 0, %s61
      %s85 = sphi 0, %s87
      %s88 = sphi 0, %s85
      %s89 = sphi 0, %s88
      %s105 = sphi 0, %s89
      %s111 = sphi 0, %s113
      %s114 = sphi 0, %s111
      %s115 = sphi 0, %s114
      %s131 = sphi 0, %s115
      %s137 = sphi 0, %s139
      %s140 = sphi 0, %s137
      %s141 = sphi 0, %s140
      %s157 = sphi 0, %s141
      %s163 = sphi 0, %s165
      %s166 = sphi 0, %s163
      %s167 = sphi 0, %s166
      %s183 = sphi 0, %s167
      %s189 = sphi 0, %s191
      %s192 = sphi 0, %s189
      %s193 = sphi 0, %s192
      %s209 = sphi 0, %s193
      %s215 = sphi 0, %s217
      %s218 = sphi 0, %s215
      %s219 = sphi 0, %s218
      %s235 = sphi 0, %s219
      %s241 = sphi 0, %s243
      %s244 = sphi 0, %s241
      %s245 = sphi 0, %s244
      %s261 = sphi 0, %s245
      %s267 = sphi 0, %s269
      %s270 = sphi 0, %s267
      %s271 = sphi 0, %s270
      %s287 = sphi 0, %s271
      %s291 = sphi 0, %s291
      %s293 = sphi 0, %s291
      %s294 = sphi 0, %s293
      %s308 = sphi 0, %s294
      %s316 = sphi 0, %s318
      %s319 = sphi 0, %s316
      %s320 = sphi 0, %s319
      %s336 = sphi 0, %s320
    $region4: #{tpu_custom_call.1} parent=1 // loop_header_branch
      %22 = sbr.rel (%p20) target = $region8
    $region5: #{tpu_custom_call.1} parent=1 // loop_body
      %s24 = ssub.s32 %s19, 1
      %s25 = ssub.s32 %s19, 2
      %s38 = sadd.s32 1, %s29
      %p39 = scmp.ge.s32.totalorder %s38, 1
      %s40 = scalar_select %p39, 0, %s38
      %s41 = sadd.s32 1, %s28
      %s42 = scalar_select %p39, %s41, %s28
      %p43 = scmp.ge.s32.totalorder %s42, 4
      %s44 = scalar_select %p43, 0, %s42
      %s45 = sadd.s32 1, %s27
      %s46 = scalar_select %p43, %s45, %s27
      %p47 = scmp.ge.s32.totalorder %s46, 1
      %s48 = scalar_select %p47, 0, %s46
      %s49 = sadd.s32 1, %s26
      %s50 = scalar_select %p47, %s49, %s26
      %p51 = scmp.ge.s32.totalorder %s50, 2
      %s52 = scalar_select %p51, 0, %s50
      %s53 = ssub.s32 %s26, %s52
      %s54 = ssub.s32 %s27, %s48
      %s55 = sor.u32 %s53, %s54
      %p56 = scmp.eq.s32.totalorder %s55, 0
      %s58 = sadd.s32 %s57, 1
      %s59 = scalar_select %p56, %s57, %s58
      %p62 = pneg %p56
      %p63 = scmp.eq.s32.totalorder %s19, 7
      %p64 = por %p62, %p63
      %p65 = scmp.ne.s32.totalorder %s57, %s60
      %p66 = scmp.eq.s32.totalorder %s19, 0
      %p67 = por %p65, %p66
      %p68 = scmp.ne.s32.totalorder %s57, %s60
      %p69 = scmp.eq.s32.totalorder %s24, 7
      %p70 = por %p68, %p69
      %p71 = scmp.ne.s32.totalorder %s60, %s61
      %p72 = scmp.eq.s32.totalorder %s24, 0
      %p73 = por %p71, %p72
      %p74 = scmp.ne.s32.totalorder %s60, %s61
      %p75 = scmp.eq.s32.totalorder %s25, 7
      %p76 = por %p74, %p75
      %p78 = scmp.ne.s32.totalorder %s61, %s77
      %p79 = scmp.eq.s32.totalorder %s25, 0
      %p80 = por %p78, %p79
      %s81 = ssub.s32 %s26, %s52
      %s82 = ssub.s32 %s29, %s40
      %s83 = sor.u32 %s81, %s82
      %p84 = scmp.eq.s32.totalorder %s83, 0
      %s86 = sadd.s32 %s85, 1
      %s87 = scalar_select %p84, %s85, %s86
      %p90 = pneg %p84
      %p91 = scmp.eq.s32.totalorder %s19, 7
      %p92 = por %p90, %p91
      %p93 = scmp.ne.s32.totalorder %s85, %s88
      %p94 = scmp.eq.s32.totalorder %s19, 0
      %p95 = por %p93, %p94
      %p96 = scmp.ne.s32.totalorder %s85, %s88
      %p97 = scmp.eq.s32.totalorder %s24, 7
      %p98 = por %p96, %p97
      %p99 = scmp.ne.s32.totalorder %s88, %s89
      %p100 = scmp.eq.s32.totalorder %s24, 0
      %p101 = por %p99, %p100
      %p102 = scmp.ne.s32.totalorder %s88, %s89
      %p103 = scmp.eq.s32.totalorder %s25, 7
      %p104 = por %p102, %p103
      %p106 = scmp.ne.s32.totalorder %s89, %s105
      %p107 = scmp.eq.s32.totalorder %s25, 0
      %p108 = por %p106, %p107
      %s109 = ssub.s32 %s28, %s44
      %p110 = scmp.eq.s32.totalorder %s109, 0
      %s112 = sadd.s32 %s111, 1
      %s113 = scalar_select %p110, %s111, %s112
      %p116 = pneg %p110
      %p117 = scmp.eq.s32.totalorder %s19, 7
      %p118 = por %p116, %p117
      %p119 = scmp.ne.s32.totalorder %s111, %s114
      %p120 = scmp.eq.s32.totalorder %s19, 0
      %p121 = por %p119, %p120
      %p122 = scmp.ne.s32.totalorder %s111, %s114
      %p123 = scmp.eq.s32.totalorder %s24, 7
      %p124 = por %p122, %p123
      %p125 = scmp.ne.s32.totalorder %s114, %s115
      %p126 = scmp.eq.s32.totalorder %s24, 0
      %p127 = por %p125, %p126
      %p128 = scmp.ne.s32.totalorder %s114, %s115
      %p129 = scmp.eq.s32.totalorder %s25, 7
      %p130 = por %p128, %p129
      %p132 = scmp.ne.s32.totalorder %s115, %s131
      %p133 = scmp.eq.s32.totalorder %s25, 0
      %p134 = por %p132, %p133
      %s135 = ssub.s32 %s28, %s44
      %p136 = scmp.eq.s32.totalorder %s135, 0
      %s138 = sadd.s32 %s137, 1
      %s139 = scalar_select %p136, %s137, %s138
      %p142 = pneg %p136
      %p143 = scmp.eq.s32.totalorder %s19, 7
      %p144 = por %p142, %p143
      %p145 = scmp.ne.s32.totalorder %s137, %s140
      %p146 = scmp.eq.s32.totalorder %s19, 0
      %p147 = por %p145, %p146
      %p148 = scmp.ne.s32.totalorder %s137, %s140
      %p149 = scmp.eq.s32.totalorder %s24, 7
      %p150 = por %p148, %p149
      %p151 = scmp.ne.s32.totalorder %s140, %s141
      %p152 = scmp.eq.s32.totalorder %s24, 0
      %p153 = por %p151, %p152
      %p154 = scmp.ne.s32.totalorder %s140, %s141
      %p155 = scmp.eq.s32.totalorder %s25, 7
      %p156 = por %p154, %p155
      %p158 = scmp.ne.s32.totalorder %s141, %s157
      %p159 = scmp.eq.s32.totalorder %s25, 0
      %p160 = por %p158, %p159
      %s161 = ssub.s32 %s28, %s44
      %p162 = scmp.eq.s32.totalorder %s161, 0
      %s164 = sadd.s32 %s163, 1
      %s165 = scalar_select %p162, %s163, %s164
      %p168 = pneg %p162
      %p169 = scmp.eq.s32.totalorder %s19, 7
      %p170 = por %p168, %p169
      %p171 = scmp.ne.s32.totalorder %s163, %s166
      %p172 = scmp.eq.s32.totalorder %s19, 0
      %p173 = por %p171, %p172
      %p174 = scmp.ne.s32.totalorder %s163, %s166
      %p175 = scmp.eq.s32.totalorder %s24, 7
      %p176 = por %p174, %p175
      %p177 = scmp.ne.s32.totalorder %s166, %s167
      %p178 = scmp.eq.s32.totalorder %s24, 0
      %p179 = por %p177, %p178
      %p180 = scmp.ne.s32.totalorder %s166, %s167
      %p181 = scmp.eq.s32.totalorder %s25, 7
      %p182 = por %p180, %p181
      %p184 = scmp.ne.s32.totalorder %s167, %s183
      %p185 = scmp.eq.s32.totalorder %s25, 0
      %p186 = por %p184, %p185
      %s187 = ssub.s32 %s28, %s44
      %p188 = scmp.eq.s32.totalorder %s187, 0
      %s190 = sadd.s32 %s189, 1
      %s191 = scalar_select %p188, %s189, %s190
      %p194 = pneg %p188
      %p195 = scmp.eq.s32.totalorder %s19, 7
      %p196 = por %p194, %p195
      %p197 = scmp.ne.s32.totalorder %s189, %s192
      %p198 = scmp.eq.s32.totalorder %s19, 0
      %p199 = por %p197, %p198
      %p200 = scmp.ne.s32.totalorder %s189, %s192
      %p201 = scmp.eq.s32.totalorder %s24, 7
      %p202 = por %p200, %p201
      %p203 = scmp.ne.s32.totalorder %s192, %s193
      %p204 = scmp.eq.s32.totalorder %s24, 0
      %p205 = por %p203, %p204
      %p206 = scmp.ne.s32.totalorder %s192, %s193
      %p207 = scmp.eq.s32.totalorder %s25, 7
      %p208 = por %p206, %p207
      %p210 = scmp.ne.s32.totalorder %s193, %s209
      %p211 = scmp.eq.s32.totalorder %s25, 0
      %p212 = por %p210, %p211
      %s213 = ssub.s32 %s28, %s44
      %p214 = scmp.eq.s32.totalorder %s213, 0
      %s216 = sadd.s32 %s215, 1
      %s217 = scalar_select %p214, %s215, %s216
      %p220 = pneg %p214
      %p221 = scmp.eq.s32.totalorder %s19, 7
      %p222 = por %p220, %p221
      %p223 = scmp.ne.s32.totalorder %s215, %s218
      %p224 = scmp.eq.s32.totalorder %s19, 0
      %p225 = por %p223, %p224
      %p226 = scmp.ne.s32.totalorder %s215, %s218
      %p227 = scmp.eq.s32.totalorder %s24, 7
      %p228 = por %p226, %p227
      %p229 = scmp.ne.s32.totalorder %s218, %s219
      %p230 = scmp.eq.s32.totalorder %s24, 0
      %p231 = por %p229, %p230
      %p232 = scmp.ne.s32.totalorder %s218, %s219
      %p233 = scmp.eq.s32.totalorder %s25, 7
      %p234 = por %p232, %p233
      %p236 = scmp.ne.s32.totalorder %s219, %s235
      %p237 = scmp.eq.s32.totalorder %s25, 0
      %p238 = por %p236, %p237
      %s239 = ssub.s32 %s28, %s44
      %p240 = scmp.eq.s32.totalorder %s239, 0
      %s242 = sadd.s32 %s241, 1
      %s243 = scalar_select %p240, %s241, %s242
      %p246 = pneg %p240
      %p247 = scmp.eq.s32.totalorder %s19, 7
      %p248 = por %p246, %p247
      %p249 = scmp.ne.s32.totalorder %s241, %s244
      %p250 = scmp.eq.s32.totalorder %s19, 0
      %p251 = por %p249, %p250
      %p252 = scmp.ne.s32.totalorder %s241, %s244
      %p253 = scmp.eq.s32.totalorder %s24, 7
      %p254 = por %p252, %p253
      %p255 = scmp.ne.s32.totalorder %s244, %s245
      %p256 = scmp.eq.s32.totalorder %s24, 0
      %p257 = por %p255, %p256
      %p258 = scmp.ne.s32.totalorder %s244, %s245
      %p259 = scmp.eq.s32.totalorder %s25, 7
      %p260 = por %p258, %p259
      %p262 = scmp.ne.s32.totalorder %s245, %s261
      %p263 = scmp.eq.s32.totalorder %s25, 0
      %p264 = por %p262, %p263
      %s265 = ssub.s32 %s28, %s44
      %p266 = scmp.eq.s32.totalorder %s265, 0
      %s268 = sadd.s32 %s267, 1
      %s269 = scalar_select %p266, %s267, %s268
      %p272 = pneg %p266
      %p273 = scmp.eq.s32.totalorder %s19, 7
      %p274 = por %p272, %p273
      %p275 = scmp.ne.s32.totalorder %s267, %s270
      %p276 = scmp.eq.s32.totalorder %s19, 0
      %p277 = por %p275, %p276
      %p278 = scmp.ne.s32.totalorder %s267, %s270
      %p279 = scmp.eq.s32.totalorder %s24, 7
      %p280 = por %p278, %p279
      %p281 = scmp.ne.s32.totalorder %s270, %s271
      %p282 = scmp.eq.s32.totalorder %s24, 0
      %p283 = por %p281, %p282
      %p284 = scmp.ne.s32.totalorder %s270, %s271
      %p285 = scmp.eq.s32.totalorder %s25, 7
      %p286 = por %p284, %p285
      %p288 = scmp.ne.s32.totalorder %s271, %s287
      %p289 = scmp.eq.s32.totalorder %s25, 0
      %p290 = por %p288, %p289
      %s292 = sadd.s32 %s291, 1
      %p295 = scmp.eq.s32.totalorder %s19, 7
      %p296 = scmp.ne.s32.totalorder %s291, %s293
      %p297 = scmp.eq.s32.totalorder %s19, 0
      %p298 = por %p296, %p297
      %p299 = scmp.ne.s32.totalorder %s291, %s293
      %p300 = scmp.eq.s32.totalorder %s24, 7
      %p301 = por %p299, %p300
      %p302 = scmp.ne.s32.totalorder %s293, %s294
      %p303 = scmp.eq.s32.totalorder %s24, 0
      %p304 = por %p302, %p303
      %p305 = scmp.ne.s32.totalorder %s293, %s294
      %p306 = scmp.eq.s32.totalorder %s25, 7
      %p307 = por %p305, %p306
      %p309 = scmp.ne.s32.totalorder %s294, %s308
      %p310 = scmp.eq.s32.totalorder %s25, 0
      %p311 = por %p309, %p310
      %s312 = ssub.s32 %s26, %s52
      %s313 = ssub.s32 %s27, %s48
      %s314 = sor.u32 %s312, %s313
      %p315 = scmp.eq.s32.totalorder %s314, 0
      %s317 = sadd.s32 %s316, 1
      %s318 = scalar_select %p315, %s316, %s317
      %p321 = pneg %p315
      %p322 = scmp.eq.s32.totalorder %s19, 7
      %p323 = por %p321, %p322
      %p324 = scmp.ne.s32.totalorder %s316, %s319
      %p325 = scmp.eq.s32.totalorder %s19, 0
      %p326 = por %p324, %p325
      %p327 = scmp.ne.s32.totalorder %s316, %s319
      %p328 = scmp.eq.s32.totalorder %s24, 7
      %p329 = por %p327, %p328
      %p330 = scmp.ne.s32.totalorder %s319, %s320
      %p331 = scmp.eq.s32.totalorder %s24, 0
      %p332 = por %p330, %p331
      %p333 = scmp.ne.s32.totalorder %s319, %s320
      %p334 = scmp.eq.s32.totalorder %s25, 7
      %p335 = por %p333, %p334
      %p337 = scmp.ne.s32.totalorder %s320, %s336
      %p338 = scmp.eq.s32.totalorder %s25, 0
      %p339 = por %p337, %p338
      %p340 = scmp.le.s32.totalorder 1, %s19
      %p341 = scmp.lt.s32.totalorder %s19, 9
      %p342 = pnand %p340, %p341
      %p343 = pneg %p342
      // Predicated region
      $region9: #{tpu_custom_call.1} parent=5 // pred_check
        _
      $region10: #{tpu_custom_call.1} parent=5 // pred_check_branch
        %345 = sbr.rel (%p342) target = $region12
      $region11: #{tpu_custom_call.1} parent=5 // pred_region
        %s346 = ssub.s32 %s19, 1
        // Predicated region
        $region13: #{tpu_custom_call.1} parent=11 // pred_check
          %p347 = pneg %p304
        $region14: #{tpu_custom_call.1} parent=11 // pred_check_branch
          %349 = sbr.rel (%p347) target = $region16
        $region15: #{tpu_custom_call.1} parent=11 // pred_region
          _
        $region16: #{tpu_custom_call.1} parent=11 // pred_fallthru
          _
      $region12: #{tpu_custom_call.1} parent=5 // pred_fallthru
        _
      %p350 = scmp.lt.s32.totalorder %s19, 8
      // Predicated region
      $region17: #{tpu_custom_call.1} parent=5 // pred_check
        %p351 = pneg %p350
      $region18: #{tpu_custom_call.1} parent=5 // pred_check_branch
        %353 = sbr.rel (%p351) target = $region20
      $region19: #{tpu_custom_call.1} parent=5 // pred_region
        // Predicated region
        $region21: #{tpu_custom_call.1} parent=19 // pred_check
          %p354 = pneg %p67
        $region22: #{tpu_custom_call.1} parent=19 // pred_check_branch
          %356 = sbr.rel (%p354) target = $region24
        $region23: #{tpu_custom_call.1} parent=19 // pred_region
          %p357 = scmp.lt.s32.totalorder %s26, 1
          %s358 = scalar_select %p357, %s26, 1
          %p359 = scmp.lt.s32.totalorder %s27, 0
          %s360 = scalar_select %p359, %s27, 0
          %s361 = sadd.s32 %s360, %s358
          %s362 = smul.addr %s361, 8
          %s363 = scalar_lea.vmem %s0, %s362
        $region24: #{tpu_custom_call.1} parent=19 // pred_fallthru
          _
        // Predicated region
        $region25: #{tpu_custom_call.1} parent=19 // pred_check
          %p364 = pneg %p95
        $region26: #{tpu_custom_call.1} parent=19 // pred_check_branch
          %366 = sbr.rel (%p364) target = $region28
        $region27: #{tpu_custom_call.1} parent=19 // pred_region
          %p367 = scmp.lt.s32.totalorder %s26, 1
          %s368 = scalar_select %p367, %s26, 1
          %p369 = scmp.lt.s32.totalorder %s29, 0
          %s370 = scalar_select %p369, %s29, 0
          %s371 = sadd.s32 %s370, %s368
          %s372 = smul.addr %s371, 8
          %s373 = scalar_lea.vmem %s1, %s372
        $region28: #{tpu_custom_call.1} parent=19 // pred_fallthru
          _
        // Predicated region
        $region29: #{tpu_custom_call.1} parent=19 // pred_check
          %p374 = pneg %p121
        $region30: #{tpu_custom_call.1} parent=19 // pred_check_branch
          %376 = sbr.rel (%p374) target = $region32
        $region31: #{tpu_custom_call.1} parent=19 // pred_region
          %p377 = scmp.lt.s32.totalorder %s28, 3
          %s378 = scalar_select %p377, %s28, 3
          %s379 = smul.addr %s378, 4
          %s380 = smul.addr %s379, 8
          %s381 = scalar_lea.vmem %s2, %s380
        $region32: #{tpu_custom_call.1} parent=19 // pred_fallthru
          _
        // Predicated region
        $region33: #{tpu_custom_call.1} parent=19 // pred_check
          %p382 = pneg %p147
        $region34: #{tpu_custom_call.1} parent=19 // pred_check_branch
          %384 = sbr.rel (%p382) target = $region36
        $region35: #{tpu_custom_call.1} parent=19 // pred_region
          %p385 = scmp.lt.s32.totalorder %s28, 3
          %s386 = scalar_select %p385, %s28, 3
          %s387 = smul.addr %s386, 4
          %s388 = smul.addr %s387, 8
          %s389 = scalar_lea.vmem %s3, %s388
        $region36: #{tpu_custom_call.1} parent=19 // pred_fallthru
          _
        // Predicated region
        $region37: #{tpu_custom_call.1} parent=19 // pred_check
          %p390 = pneg %p173
        $region38: #{tpu_custom_call.1} parent=19 // pred_check_branch
          %392 = sbr.rel (%p390) target = $region40
        $region39: #{tpu_custom_call.1} parent=19 // pred_region
          %p393 = scmp.lt.s32.totalorder %s28, 3
          %s394 = scalar_select %p393, %s28, 3
          %s395 = smul.addr %s394, 4
          %s396 = smul.addr %s395, 8
          %s397 = scalar_lea.vmem %s4, %s396
        $region40: #{tpu_custom_call.1} parent=19 // pred_fallthru
          _
        // Predicated region
        $region41: #{tpu_custom_call.1} parent=19 // pred_check
          %p398 = pneg %p199
        $region42: #{tpu_custom_call.1} parent=19 // pred_check_branch
          %400 = sbr.rel (%p398) target = $region44
        $region43: #{tpu_custom_call.1} parent=19 // pred_region
          %p401 = scmp.lt.s32.totalorder %s28, 3
          %s402 = scalar_select %p401, %s28, 3
          %s403 = scalar_lea.vmem %s5, %s402
        $region44: #{tpu_custom_call.1} parent=19 // pred_fallthru
          _
        // Predicated region
        $region45: #{tpu_custom_call.1} parent=19 // pred_check
          %p404 = pneg %p225
        $region46: #{tpu_custom_call.1} parent=19 // pred_check_branch
          %406 = sbr.rel (%p404) target = $region48
        $region47: #{tpu_custom_call.1} parent=19 // pred_region
          %p407 = scmp.lt.s32.totalorder %s28, 3
          %s408 = scalar_select %p407, %s28, 3
          %s409 = scalar_lea.vmem %s6, %s408
        $region48: #{tpu_custom_call.1} parent=19 // pred_fallthru
          _
        // Predicated region
        $region49: #{tpu_custom_call.1} parent=19 // pred_check
          %p410 = pneg %p251
        $region50: #{tpu_custom_call.1} parent=19 // pred_check_branch
          %412 = sbr.rel (%p410) target = $region52
        $region51: #{tpu_custom_call.1} parent=19 // pred_region
          %p413 = scmp.lt.s32.totalorder %s28, 3
          %s414 = scalar_select %p413, %s28, 3
          %s415 = scalar_lea.vmem %s7, %s414
        $region52: #{tpu_custom_call.1} parent=19 // pred_fallthru
          _
        // Predicated region
        $region53: #{tpu_custom_call.1} parent=19 // pred_check
          %p416 = pneg %p277
        $region54: #{tpu_custom_call.1} parent=19 // pred_check_branch
          %418 = sbr.rel (%p416) target = $region56
        $region55: #{tpu_custom_call.1} parent=19 // pred_region
          %p419 = scmp.lt.s32.totalorder %s28, 3
          %s420 = scalar_select %p419, %s28, 3
          %s421 = smul.addr %s420, 8
          %s422 = scalar_lea.vmem %s8, %s421
        $region56: #{tpu_custom_call.1} parent=19 // pred_fallthru
          _
      $region20: #{tpu_custom_call.1} parent=5 // pred_fallthru
        _
      %p423 = scmp.le.s32.totalorder 1, %s19
      %p424 = scmp.lt.s32.totalorder %s19, 9
      %p425 = pnand %p423, %p424
      %p426 = pneg %p425
      // Predicated region
      $region57: #{tpu_custom_call.1} parent=5 // pred_check
        _
      $region58: #{tpu_custom_call.1} parent=5 // pred_check_branch
        %428 = sbr.rel (%p425) target = $region60
      $region59: #{tpu_custom_call.1} parent=5 // pred_region
        %s429 = ssub.s32 %s19, 1
        %p430 = scmp.lt.s32.totalorder %s30, 1
        %s431 = scalar_select %p430, %s30, 1
        %p432 = scmp.lt.s32.totalorder %s31, 0
        %s433 = scalar_select %p432, %s31, 0
        %s434 = sadd.s32 %s433, %s431
        %s435 = smul.addr %s434, 8
        %s436 = scalar_lea.vmem %s0, %s435
        %p437 = pneg %p73
        %p438 = pneg %p70
        %p439 = scmp.lt.s32.totalorder %s30, 1
        %s440 = scalar_select %p439, %s30, 1
        %p441 = scmp.lt.s32.totalorder %s33, 0
        %s442 = scalar_select %p441, %s33, 0
        %s443 = sadd.s32 %s442, %s440
        %s444 = smul.addr %s443, 8
        %s445 = scalar_lea.vmem %s1, %s444
        %p446 = pneg %p101
        %p447 = pneg %p98
        %p448 = scmp.lt.s32.totalorder %s32, 3
        %s449 = scalar_select %p448, %s32, 3
        %s450 = smul.addr %s449, 4
        %s451 = smul.addr %s450, 8
        %s452 = scalar_lea.vmem %s2, %s451
        %p453 = pneg %p127
        %p454 = pneg %p124
        %p455 = scmp.lt.s32.totalorder %s32, 3
        %s456 = scalar_select %p455, %s32, 3
        %s457 = smul.addr %s456, 4
        %s458 = smul.addr %s457, 8
        %s459 = scalar_lea.vmem %s3, %s458
        %p460 = pneg %p153
        %p461 = pneg %p150
        %p462 = scmp.lt.s32.totalorder %s32, 3
        %s463 = scalar_select %p462, %s32, 3
        %s464 = smul.addr %s463, 4
        %s465 = smul.addr %s464, 8
        %s466 = scalar_lea.vmem %s4, %s465
        %p467 = pneg %p179
        %p468 = pneg %p176
        %p469 = scmp.lt.s32.totalorder %s32, 3
        %s470 = scalar_select %p469, %s32, 3
        %s471 = scalar_lea.vmem %s5, %s470
        %p472 = pneg %p205
        %p473 = pneg %p202
        %p474 = scmp.lt.s32.totalorder %s32, 3
        %s475 = scalar_select %p474, %s32, 3
        %s476 = scalar_lea.vmem %s6, %s475
        %p477 = pneg %p231
        %p478 = pneg %p228
        %p479 = scmp.lt.s32.totalorder %s32, 3
        %s480 = scalar_select %p479, %s32, 3
        %s481 = scalar_lea.vmem %s7, %s480
        %p482 = pneg %p257
        %p483 = pneg %p254
        %p484 = scmp.lt.s32.totalorder %s32, 3
        %s485 = scalar_select %p484, %s32, 3
        %s486 = smul.addr %s485, 8
        %s487 = scalar_lea.vmem %s8, %s486
        %p488 = pneg %p283
        %p489 = pneg %p280
        %p490 = pneg %p304
        %p491 = pneg %p301
        %p492 = pneg %p332
        %p493 = pneg %p329
        %s494 = sand.u32 %s319, 1
        %s495 = scalar_lea.sflag [#allocation8], %s494
        %s496 = sand.u32 %s319, 1
        %s497 = smul.addr %s496, 8
        %s498 = scalar_lea.vmem [#allocation7], %s497
        %p499 = scmp.lt.s32.totalorder %s30, 1
        %s500 = scalar_select %p499, %s30, 1
        %p501 = scmp.lt.s32.totalorder %s31, 0
        %s502 = scalar_select %p501, %s31, 0
        %s503 = sadd.s32 %s502, %s500
        %s504 = smul.addr %s503, 8
        %s505 = scalar_lea.vmem %s0, %s504
        %p506 = scmp.lt.s32.totalorder %s30, 1
        %s507 = scalar_select %p506, %s30, 1
        %p508 = scmp.lt.s32.totalorder %s33, 0
        %s509 = scalar_select %p508, %s33, 0
        %s510 = sadd.s32 %s509, %s507
        %s511 = smul.addr %s510, 8
        %s512 = scalar_lea.vmem %s1, %s511
        %p513 = scmp.lt.s32.totalorder %s32, 3
        %s514 = scalar_select %p513, %s32, 3
        %s515 = smul.addr %s514, 4
        %s516 = smul.addr %s515, 8
        %s517 = scalar_lea.vmem %s2, %s516
        %p518 = scmp.lt.s32.totalorder %s32, 3
        %s519 = scalar_select %p518, %s32, 3
        %s520 = smul.addr %s519, 4
        %s521 = smul.addr %s520, 8
        %s522 = scalar_lea.vmem %s3, %s521
        %p523 = scmp.lt.s32.totalorder %s32, 3
        %s524 = scalar_select %p523, %s32, 3
        %s525 = smul.addr %s524, 4
        %s526 = smul.addr %s525, 8
        %s527 = scalar_lea.vmem %s4, %s526
        %p528 = scmp.lt.s32.totalorder %s32, 3
        %s529 = scalar_select %p528, %s32, 3
        %s530 = scalar_lea.vmem %s5, %s529
        %p531 = scmp.lt.s32.totalorder %s32, 3
        %s532 = scalar_select %p531, %s32, 3
        %s533 = scalar_lea.vmem %s6, %s532
        %p534 = scmp.lt.s32.totalorder %s32, 3
        %s535 = scalar_select %p534, %s32, 3
        %s536 = scalar_lea.vmem %s7, %s535
        %p537 = scmp.lt.s32.totalorder %s32, 3
        %s538 = scalar_select %p537, %s32, 3
        %s539 = smul.addr %s538, 8
        %s540 = scalar_lea.vmem %s8, %s539
        %p541 = scmp.eq.s32.totalorder %s32, 0
        %p542 = scmp.eq.s32.totalorder %s33, 0
        %p543 = pnand %p541, %p542
        %p544 = pneg %p543
        // Predicated region
        $region61: #{tpu_custom_call.1} parent=59 // pred_check
          _
        $region62: #{tpu_custom_call.1} parent=59 // pred_check_branch
          %546 = sbr.rel (%p543) target = $region64
        $region63: #{tpu_custom_call.1} parent=59 // pred_region
          %vm547 = vcmask 261120
          %548 = vst.msk [vmem:[#allocation6] sm:$0xff] %vm547, 0.0
        $region64: #{tpu_custom_call.1} parent=59 // pred_fallthru
          _
        // Predicated region
        $region65: #{tpu_custom_call.1} parent=59 // pred_check
          %p549 = pneg %p542
        $region66: #{tpu_custom_call.1} parent=59 // pred_check_branch
          %551 = sbr.rel (%p549) target = $region68
        $region67: #{tpu_custom_call.1} parent=59 // pred_region
          %v552 = vld [vmem:[%s505] sm:$0xff]
          %v553 = vld [vmem:[%s517] sm:$0xff]
          %v554 = vld [vmem:[%s517 + $0x8] sm:$0xff]
          %v555 = vld [vmem:[%s517 + $0x10] sm:$0xff]
          %v556 = vld [vmem:[%s517 + $0x18] sm:$0xff]
          %v557 = vld [vmem:[%s530] sm:$0x1]
          %v559 = vlaneseq
          %v560 = vshrl.u32 %v559, 7
          %v561 = vsub.s32 0, %v560
          %v562 = vrot.slane %v557, %v561
          %vm564 = vcmask 261120
          %v566 = vsel %vm564, %v552, 0
          %568 = vmatprep.subr.mxu0 0.0
          %569 = vmatpush1.msra.mxu0 %v553
          %570 = vmatprep.subr.mxu0 0.0
          %571 = vmatpush1.msra.mxu0 %v554
          %572 = vmatprep.subr.mxu0 0.0
          %573 = vmatpush1.msra.mxu0 %v555
          %574 = vmatprep.subr.mxu0 0.0
          %575 = vmatpush1.msra.mxu0 %v556
          %576 = vmatprep.subr.mxu0 0.0
          %577 = vmatpush1.msra.mxu0 0.0
          %578 = vmatprep.subr.mxu0 0.0
          %579 = vmatpush1.msra.mxu0 0.0
          %580 = vmatprep.subr.mxu0 0.0
          %581 = vmatpush1.msra.mxu0 0.0
          %582 = vmatprep.subr.mxu0 0.0
          %583 = vmatpush1.msra.mxu0 0.0
          %584 = vmatprep.subr.mxu0 0.0
          %585 = vmatpush1.msra.mxu0 0.0
          %586 = vmatprep.subr.mxu0 0.0
          %587 = vmatpush1.msra.mxu0 0.0
          %588 = vmatprep.subr.mxu0 0.0
          %589 = vmatpush1.msra.mxu0 0.0
          %590 = vmatprep.subr.mxu0 0.0
          %591 = vmatpush1.msra.mxu0 0.0
          %592 = vmatprep.subr.mxu0 0.0
          %593 = vmatpush1.msra.mxu0 0.0
          %594 = vmatprep.subr.mxu0 0.0
          %595 = vmatpush1.msra.mxu0 0.0
          %596 = vmatprep.subr.mxu0 0.0
          %597 = vmatpush1.msra.mxu0 0.0
          %598 = vmatprep.subr.mxu0 0.0
          %599 = vmatpush1.msra.mxu0 0.0
          %600 = vmatprep.subr.mxu0 0.0
          %601 = vmatpush1.msra.mxu0 0.0
          %602 = vmatprep.subr.mxu0 0.0
          %603 = vmatpush1.msra.mxu0 0.0
          %604 = vmatprep.subr.mxu0 0.0
          %605 = vmatpush1.msra.mxu0 0.0
          %606 = vmatprep.subr.mxu0 0.0
          %607 = vmatpush1.msra.mxu0 0.0
          %608 = vmatprep.subr.mxu0 0.0
          %609 = vmatpush1.msra.mxu0 0.0
          %610 = vmatprep.subr.mxu0 0.0
          %611 = vmatpush1.msra.mxu0 0.0
          %612 = vmatprep.subr.mxu0 0.0
          %613 = vmatpush1.msra.mxu0 0.0
          %614 = vmatprep.subr.mxu0 0.0
          %615 = vmatpush1.msra.mxu0 0.0
          %616 = vmatprep.subr.mxu0 0.0
          %617 = vmatpush1.msra.mxu0 0.0
          %618 = vmatprep.subr.mxu0 0.0
          %619 = vmatpush1.msra.mxu0 0.0
          %620 = vmatprep.subr.mxu0 0.0
          %621 = vmatpush1.msra.mxu0 0.0
          %622 = vmatprep.subr.mxu0 0.0
          %623 = vmatpush1.msra.mxu0 0.0
          %624 = vmatprep.subr.mxu0 0.0
          %625 = vmatpush1.msra.mxu0 0.0
          %626 = vmatprep.subr.mxu0 0.0
          %627 = vmatpush1.msra.mxu0 0.0
          %628 = vmatprep.subr.mxu0 0.0
          %629 = vmatpush1.msra.mxu0 0.0
          %630 = vmatprep.subr.mxu0 0.0
          %631 = vmatpush1.msra.mxu0 0.0
          %632 = vmatprep.mubr.f32.mxu0 0.0
          %633 = vmatmul.mubr.f32.gmra.mrb[0].mxu0 %v566
          %v634 = vpop.f32.mrb[0].mxu0
          %v635 = vadd.f32 %v562, %v634
          %v636 = vpop.f32.mrb[0].mxu0
          %637 = vdwg.mxu0
          %v638 = vmul.f32 %v635, 0.35355338
          %vm639 = vcmask 64512
          %640 = vst.msk [vmem:[#allocation2] sm:$0xff] %vm639, %v638
          %vm641 = vcmask 7168
          %642 = vst.msk [vmem:[#allocation3] sm:$0xff] %vm641, -inf
          %643 = vst.msk [vmem:[#allocation4] sm:$0xff] %vm641, 0.0
          %644 = vst.msk [vmem:[#allocation5] sm:$0xff] %vm639, 0.0
        $region68: #{tpu_custom_call.1} parent=59 // pred_fallthru
          _
        %v645 = vld [vmem:[%s512] sm:$0xff]
        %v646 = vld [vmem:[%s522] sm:$0xff]
        %v647 = vld [vmem:[%s522 + $0x8] sm:$0xff]
        %v648 = vld [vmem:[%s522 + $0x10] sm:$0xff]
        %v649 = vld [vmem:[%s522 + $0x18] sm:$0xff]
        %v650 = vld [vmem:[%s533] sm:$0x1]
        %v652 = vlaneseq
        %v653 = vshrl.u32 %v652, 7
        %v654 = vsub.s32 0, %v653
        %v655 = vrot.slane %v650, %v654
        %vm657 = vcmask 261120
        %v659 = vsel %vm657, %v645, 0
        %661 = vmatprep.subr.mxu0 0.0
        %662 = vmatpush1.msra.mxu0 %v646
        %663 = vmatprep.subr.mxu0 0.0
        %664 = vmatpush1.msra.mxu0 %v647
        %665 = vmatprep.subr.mxu0 0.0
        %666 = vmatpush1.msra.mxu0 %v648
        %667 = vmatprep.subr.mxu0 0.0
        %668 = vmatpush1.msra.mxu0 %v649
        %669 = vmatprep.subr.mxu0 0.0
        %670 = vmatpush1.msra.mxu0 0.0
        %671 = vmatprep.subr.mxu0 0.0
        %672 = vmatpush1.msra.mxu0 0.0
        %673 = vmatprep.subr.mxu0 0.0
        %674 = vmatpush1.msra.mxu0 0.0
        %675 = vmatprep.subr.mxu0 0.0
        %676 = vmatpush1.msra.mxu0 0.0
        %677 = vmatprep.subr.mxu0 0.0
        %678 = vmatpush1.msra.mxu0 0.0
        %679 = vmatprep.subr.mxu0 0.0
        %680 = vmatpush1.msra.mxu0 0.0
        %681 = vmatprep.subr.mxu0 0.0
        %682 = vmatpush1.msra.mxu0 0.0
        %683 = vmatprep.subr.mxu0 0.0
        %684 = vmatpush1.msra.mxu0 0.0
        %685 = vmatprep.subr.mxu0 0.0
        %686 = vmatpush1.msra.mxu0 0.0
        %687 = vmatprep.subr.mxu0 0.0
        %688 = vmatpush1.msra.mxu0 0.0
        %689 = vmatprep.subr.mxu0 0.0
        %690 = vmatpush1.msra.mxu0 0.0
        %691 = vmatprep.subr.mxu0 0.0
        %692 = vmatpush1.msra.mxu0 0.0
        %693 = vmatprep.subr.mxu0 0.0
        %694 = vmatpush1.msra.mxu0 0.0
        %695 = vmatprep.subr.mxu0 0.0
        %696 = vmatpush1.msra.mxu0 0.0
        %697 = vmatprep.subr.mxu0 0.0
        %698 = vmatpush1.msra.mxu0 0.0
        %699 = vmatprep.subr.mxu0 0.0
        %700 = vmatpush1.msra.mxu0 0.0
        %701 = vmatprep.subr.mxu0 0.0
        %702 = vmatpush1.msra.mxu0 0.0
        %703 = vmatprep.subr.mxu0 0.0
        %704 = vmatpush1.msra.mxu0 0.0
        %705 = vmatprep.subr.mxu0 0.0
        %706 = vmatpush1.msra.mxu0 0.0
        %707 = vmatprep.subr.mxu0 0.0
        %708 = vmatpush1.msra.mxu0 0.0
        %709 = vmatprep.subr.mxu0 0.0
        %710 = vmatpush1.msra.mxu0 0.0
        %711 = vmatprep.subr.mxu0 0.0
        %712 = vmatpush1.msra.mxu0 0.0
        %713 = vmatprep.subr.mxu0 0.0
        %714 = vmatpush1.msra.mxu0 0.0
        %715 = vmatprep.subr.mxu0 0.0
        %716 = vmatpush1.msra.mxu0 0.0
        %717 = vmatprep.subr.mxu0 0.0
        %718 = vmatpush1.msra.mxu0 0.0
        %719 = vmatprep.subr.mxu0 0.0
        %720 = vmatpush1.msra.mxu0 0.0
        %721 = vmatprep.subr.mxu0 0.0
        %722 = vmatpush1.msra.mxu0 0.0
        %723 = vmatprep.subr.mxu0 0.0
        %724 = vmatpush1.msra.mxu0 0.0
        %725 = vmatprep.mubr.f32.mxu0 0.0
        %726 = vmatmul.mubr.f32.gmra.mrb[0].mxu0 %v659
        %v727 = vpop.f32.mrb[0].mxu0
        %v728 = vadd.f32 %v655, %v727
        %v729 = vpop.f32.mrb[0].mxu0
        %730 = vdwg.mxu0
        %v731 = vld [vmem:[%s527] sm:$0xff]
        %v732 = vld [vmem:[%s527 + $0x8] sm:$0xff]
        %v733 = vld [vmem:[%s527 + $0x10] sm:$0xff]
        %v734 = vld [vmem:[%s527 + $0x18] sm:$0xff]
        %v735 = vld [vmem:[%s536] sm:$0x1]
        %v737 = vlaneseq
        %v738 = vshrl.u32 %v737, 7
        %v739 = vsub.s32 0, %v738
        %v740 = vrot.slane %v735, %v739
        %742 = vmatprep.subr.mxu0 0.0
        %743 = vmatpush1.msra.mxu0 %v731
        %744 = vmatprep.subr.mxu0 0.0
        %745 = vmatpush1.msra.mxu0 %v732
        %746 = vmatprep.subr.mxu0 0.0
        %747 = vmatpush1.msra.mxu0 %v733
        %748 = vmatprep.subr.mxu0 0.0
        %749 = vmatpush1.msra.mxu0 %v734
        %750 = vmatprep.subr.mxu0 0.0
        %751 = vmatpush1.msra.mxu0 0.0
        %752 = vmatprep.subr.mxu0 0.0
        %753 = vmatpush1.msra.mxu0 0.0
        %754 = vmatprep.subr.mxu0 0.0
        %755 = vmatpush1.msra.mxu0 0.0
        %756 = vmatprep.subr.mxu0 0.0
        %757 = vmatpush1.msra.mxu0 0.0
        %758 = vmatprep.subr.mxu0 0.0
        %759 = vmatpush1.msra.mxu0 0.0
        %760 = vmatprep.subr.mxu0 0.0
        %761 = vmatpush1.msra.mxu0 0.0
        %762 = vmatprep.subr.mxu0 0.0
        %763 = vmatpush1.msra.mxu0 0.0
        %764 = vmatprep.subr.mxu0 0.0
        %765 = vmatpush1.msra.mxu0 0.0
        %766 = vmatprep.subr.mxu0 0.0
        %767 = vmatpush1.msra.mxu0 0.0
        %768 = vmatprep.subr.mxu0 0.0
        %769 = vmatpush1.msra.mxu0 0.0
        %770 = vmatprep.subr.mxu0 0.0
        %771 = vmatpush1.msra.mxu0 0.0
        %772 = vmatprep.subr.mxu0 0.0
        %773 = vmatpush1.msra.mxu0 0.0
        %774 = vmatprep.subr.mxu0 0.0
        %775 = vmatpush1.msra.mxu0 0.0
        %776 = vmatprep.subr.mxu0 0.0
        %777 = vmatpush1.msra.mxu0 0.0
        %778 = vmatprep.subr.mxu0 0.0
        %779 = vmatpush1.msra.mxu0 0.0
        %780 = vmatprep.subr.mxu0 0.0
        %781 = vmatpush1.msra.mxu0 0.0
        %782 = vmatprep.subr.mxu0 0.0
        %783 = vmatpush1.msra.mxu0 0.0
        %784 = vmatprep.subr.mxu0 0.0
        %785 = vmatpush1.msra.mxu0 0.0
        %786 = vmatprep.subr.mxu0 0.0
        %787 = vmatpush1.msra.mxu0 0.0
        %788 = vmatprep.subr.mxu0 0.0
        %789 = vmatpush1.msra.mxu0 0.0
        %790 = vmatprep.subr.mxu0 0.0
        %791 = vmatpush1.msra.mxu0 0.0
        %792 = vmatprep.subr.mxu0 0.0
        %793 = vmatpush1.msra.mxu0 0.0
        %794 = vmatprep.subr.mxu0 0.0
        %795 = vmatpush1.msra.mxu0 0.0
        %796 = vmatprep.subr.mxu0 0.0
        %797 = vmatpush1.msra.mxu0 0.0
        %798 = vmatprep.subr.mxu0 0.0
        %799 = vmatpush1.msra.mxu0 0.0
        %800 = vmatprep.subr.mxu0 0.0
        %801 = vmatpush1.msra.mxu0 0.0
        %802 = vmatprep.subr.mxu0 0.0
        %803 = vmatpush1.msra.mxu0 0.0
        %804 = vmatprep.subr.mxu0 0.0
        %805 = vmatpush1.msra.mxu0 0.0
        %806 = vmatprep.mubr.f32.mxu0 0.0
        %807 = vmatmul.mubr.f32.gmra.mrb[0].mxu0 %v659
        %v808 = vpop.f32.mrb[0].mxu0
        %v809 = vadd.f32 %v740, %v808
        %v810 = vpop.f32.mrb[0].mxu0
        %811 = vdwg.mxu0
        %v812 = vld [vmem:[#allocation2] sm:$0xff]
        %vm813 = vcmask 64512
        %v815 = vsel %vm813, %v812, 0
        %v818 = vsel %vm813, %v728, 0
        %820 = vmatprep.subr.mxu0 0.0
        %821 = vmatpush1.xpose.msra.mxu0 %v818
        %822 = vmatprep.subr.mxu0 0.0
        %823 = vmatpush1.xpose.msra.mxu0 0.0
        %824 = vmatprep.subr.mxu0 0.0
        %825 = vmatpush1.xpose.msra.mxu0 0.0
        %826 = vmatprep.subr.mxu0 0.0
        %827 = vmatpush1.xpose.msra.mxu0 0.0
        %828 = vmatprep.subr.mxu0 0.0
        %829 = vmatpush1.xpose.msra.mxu0 0.0
        %830 = vmatprep.subr.mxu0 0.0
        %831 = vmatpush1.xpose.msra.mxu0 0.0
        %832 = vmatprep.subr.mxu0 0.0
        %833 = vmatpush1.xpose.msra.mxu0 0.0
        %834 = vmatprep.subr.mxu0 0.0
        %835 = vmatpush1.xpose.msra.mxu0 0.0
        %836 = vmatprep.subr.mxu0 0.0
        %837 = vmatpush1.xpose.msra.mxu0 0.0
        %838 = vmatprep.subr.mxu0 0.0
        %839 = vmatpush1.xpose.msra.mxu0 0.0
        %840 = vmatprep.subr.mxu0 0.0
        %841 = vmatpush1.xpose.msra.mxu0 0.0
        %842 = vmatprep.subr.mxu0 0.0
        %843 = vmatpush1.xpose.msra.mxu0 0.0
        %844 = vmatprep.subr.mxu0 0.0
        %845 = vmatpush1.xpose.msra.mxu0 0.0
        %846 = vmatprep.subr.mxu0 0.0
        %847 = vmatpush1.xpose.msra.mxu0 0.0
        %848 = vmatprep.subr.mxu0 0.0
        %849 = vmatpush1.xpose.msra.mxu0 0.0
        %850 = vmatprep.subr.mxu0 0.0
        %851 = vmatpush1.xpose.msra.mxu0 0.0
        %852 = vmatprep.subr.mxu0 0.0
        %853 = vmatpush1.xpose.msra.mxu0 0.0
        %854 = vmatprep.subr.mxu0 0.0
        %855 = vmatpush1.xpose.msra.mxu0 0.0
        %856 = vmatprep.subr.mxu0 0.0
        %857 = vmatpush1.xpose.msra.mxu0 0.0
        %858 = vmatprep.subr.mxu0 0.0
        %859 = vmatpush1.xpose.msra.mxu0 0.0
        %860 = vmatprep.subr.mxu0 0.0
        %861 = vmatpush1.xpose.msra.mxu0 0.0
        %862 = vmatprep.subr.mxu0 0.0
        %863 = vmatpush1.xpose.msra.mxu0 0.0
        %864 = vmatprep.subr.mxu0 0.0
        %865 = vmatpush1.xpose.msra.mxu0 0.0
        %866 = vmatprep.subr.mxu0 0.0
        %867 = vmatpush1.xpose.msra.mxu0 0.0
        %868 = vmatprep.subr.mxu0 0.0
        %869 = vmatpush1.xpose.msra.mxu0 0.0
        %870 = vmatprep.subr.mxu0 0.0
        %871 = vmatpush1.xpose.msra.mxu0 0.0
        %872 = vmatprep.subr.mxu0 0.0
        %873 = vmatpush1.xpose.msra.mxu0 0.0
        %874 = vmatprep.subr.mxu0 0.0
        %875 = vmatpush1.xpose.msra.mxu0 0.0
        %876 = vmatprep.subr.mxu0 0.0
        %877 = vmatpush1.xpose.msra.mxu0 0.0
        %878 = vmatprep.subr.mxu0 0.0
        %879 = vmatpush1.xpose.msra.mxu0 0.0
        %880 = vmatprep.subr.mxu0 0.0
        %881 = vmatpush1.xpose.msra.mxu0 0.0
        %882 = vmatprep.subr.mxu0 0.0
        %883 = vmatpush1.xpose.msra.mxu0 0.0
        %884 = vmatprep.mubr.f32.mxu0 0.0
        %885 = vmatmul.mubr.f32.gmra.mrb[0].mxu0 %v815
        %v886 = vpop.f32.mrb[0].mxu0
        %v887 = vadd.f32 0.0, %v886
        %v888 = vpop.f32.mrb[0].mxu0
        %889 = vdwg.mxu0
        %v890 = vld [vmem:[#allocation3] sm:$0xff]
        %v891 = vsel %vm813, %v887, -inf
        %892 = vmax.xlane.f32.xlu0 %v891
        %v893 = vpop.xlane.xlu0 %892
        %v894 = vmax.f32 %v890, %v893
        %v895 = vsub.f32 %v890, %v894
        %v896 = vmul.f32 %v895, 1.442695
        %v897 = vpow.pop %v896
        %899 = vset.pattern.permute.xlu0 0
        %900 = vperm.xlu0 %899, %v894
        %v901 = vpop.permute.xlu0 %900
        %v903 = vsub.f32 %v887, %v901
        %v904 = vmul.f32 %v903, 1.442695
        %v905 = vpow.pop %v904
        %v906 = vld [vmem:[#allocation4] sm:$0xff]
        %v907 = vmul.f32 %v897, %v906
        %v908 = vsel %vm813, %v905, 0.0
        %909 = vadd.xlane.f32.xlu0 %v908
        %v910 = vpop.xlane.xlu0 %909
        %v911 = vadd.f32 %v907, %v910
        %vm912 = vcmask 7168
        %913 = vst.msk [vmem:[#allocation4] sm:$0xff] %vm912, %v911
        %v914 = vld [vmem:[#allocation5] sm:$0xff]
        %916 = vset.pattern.permute.xlu0 0
        %917 = vperm.xlu0 %916, %v897
        %v918 = vpop.permute.xlu0 %917
        %v920 = vmul.f32 %v918, %v914
        %v922 = vsel %vm813, %v905, 0
        %924 = vmatprep.subr.mxu0 0.0
        %925 = vmatpush1.msra.mxu0 %v809
        %926 = vmatprep.subr.mxu0 0.0
        %927 = vmatpush1.msra.mxu0 0.0
        %928 = vmatprep.subr.mxu0 0.0
        %929 = vmatpush1.msra.mxu0 0.0
        %930 = vmatprep.subr.mxu0 0.0
        %931 = vmatpush1.msra.mxu0 0.0
        %932 = vmatprep.subr.mxu0 0.0
        %933 = vmatpush1.msra.mxu0 0.0
        %934 = vmatprep.subr.mxu0 0.0
        %935 = vmatpush1.msra.mxu0 0.0
        %936 = vmatprep.subr.mxu0 0.0
        %937 = vmatpush1.msra.mxu0 0.0
        %938 = vmatprep.subr.mxu0 0.0
        %939 = vmatpush1.msra.mxu0 0.0
        %940 = vmatprep.subr.mxu0 0.0
        %941 = vmatpush1.msra.mxu0 0.0
        %942 = vmatprep.subr.mxu0 0.0
        %943 = vmatpush1.msra.mxu0 0.0
        %944 = vmatprep.subr.mxu0 0.0
        %945 = vmatpush1.msra.mxu0 0.0
        %946 = vmatprep.subr.mxu0 0.0
        %947 = vmatpush1.msra.mxu0 0.0
        %948 = vmatprep.subr.mxu0 0.0
        %949 = vmatpush1.msra.mxu0 0.0
        %950 = vmatprep.subr.mxu0 0.0
        %951 = vmatpush1.msra.mxu0 0.0
        %952 = vmatprep.subr.mxu0 0.0
        %953 = vmatpush1.msra.mxu0 0.0
        %954 = vmatprep.subr.mxu0 0.0
        %955 = vmatpush1.msra.mxu0 0.0
        %956 = vmatprep.subr.mxu0 0.0
        %957 = vmatpush1.msra.mxu0 0.0
        %958 = vmatprep.subr.mxu0 0.0
        %959 = vmatpush1.msra.mxu0 0.0
        %960 = vmatprep.subr.mxu0 0.0
        %961 = vmatpush1.msra.mxu0 0.0
        %962 = vmatprep.subr.mxu0 0.0
        %963 = vmatpush1.msra.mxu0 0.0
        %964 = vmatprep.subr.mxu0 0.0
        %965 = vmatpush1.msra.mxu0 0.0
        %966 = vmatprep.subr.mxu0 0.0
        %967 = vmatpush1.msra.mxu0 0.0
        %968 = vmatprep.subr.mxu0 0.0
        %969 = vmatpush1.msra.mxu0 0.0
        %970 = vmatprep.subr.mxu0 0.0
        %971 = vmatpush1.msra.mxu0 0.0
        %972 = vmatprep.subr.mxu0 0.0
        %973 = vmatpush1.msra.mxu0 0.0
        %974 = vmatprep.subr.mxu0 0.0
        %975 = vmatpush1.msra.mxu0 0.0
        %976 = vmatprep.subr.mxu0 0.0
        %977 = vmatpush1.msra.mxu0 0.0
        %978 = vmatprep.subr.mxu0 0.0
        %979 = vmatpush1.msra.mxu0 0.0
        %980 = vmatprep.subr.mxu0 0.0
        %981 = vmatpush1.msra.mxu0 0.0
        %982 = vmatprep.subr.mxu0 0.0
        %983 = vmatpush1.msra.mxu0 0.0
        %984 = vmatprep.subr.mxu0 0.0
        %985 = vmatpush1.msra.mxu0 0.0
        %986 = vmatprep.subr.mxu0 0.0
        %987 = vmatpush1.msra.mxu0 0.0
        %988 = vmatprep.mubr.f32.mxu0 0.0
        %989 = vmatmul.mubr.f32.gmra.mrb[0].mxu0 %v922
        %v990 = vpop.f32.mrb[0].mxu0
        %v991 = vadd.f32 0.0, %v990
        %v992 = vpop.f32.mrb[0].mxu0
        %993 = vdwg.mxu0
        %v994 = vadd.f32 %v920, %v991
        %995 = vst.msk [vmem:[#allocation5] sm:$0xff] %vm813, %v994
        %996 = vst.msk [vmem:[#allocation3] sm:$0xff] %vm912, %v894
        // Predicated region
        $region69: #{tpu_custom_call.1} parent=59 // pred_check
          %p997 = pneg %p542
        $region70: #{tpu_custom_call.1} parent=59 // pred_check_branch
          %999 = sbr.rel (%p997) target = $region72
        $region71: #{tpu_custom_call.1} parent=59 // pred_region
          %v1000 = vld [vmem:[#allocation5] sm:$0xff]
          %v1001 = vld [vmem:[#allocation4] sm:$0xff]
          %v1002 = vrcp.pop %v1001
          %1004 = vset.pattern.permute.xlu0 0
          %1005 = vperm.xlu0 %1004, %v1002
          %v1006 = vpop.permute.xlu0 %1005
          %v1008 = vmul.f32 %v1000, %v1006
          %v1009 = vld [vmem:[#allocation6] sm:$0xff]
          %v1010 = vld [vmem:[%s540] sm:$0xff]
          %v1012 = vsel %vm813, %v1008, 0
          %1014 = vmatprep.subr.mxu0 0.0
          %1015 = vmatpush1.msra.mxu0 %v1010
          %1016 = vmatprep.subr.mxu0 0.0
          %1017 = vmatpush1.msra.mxu0 0.0
          %1018 = vmatprep.subr.mxu0 0.0
          %1019 = vmatpush1.msra.mxu0 0.0
          %1020 = vmatprep.subr.mxu0 0.0
          %1021 = vmatpush1.msra.mxu0 0.0
          %1022 = vmatprep.subr.mxu0 0.0
          %1023 = vmatpush1.msra.mxu0 0.0
          %1024 = vmatprep.subr.mxu0 0.0
          %1025 = vmatpush1.msra.mxu0 0.0
          %1026 = vmatprep.subr.mxu0 0.0
          %1027 = vmatpush1.msra.mxu0 0.0
          %1028 = vmatprep.subr.mxu0 0.0
          %1029 = vmatpush1.msra.mxu0 0.0
          %1030 = vmatprep.subr.mxu0 0.0
          %1031 = vmatpush1.msra.mxu0 0.0
          %1032 = vmatprep.subr.mxu0 0.0
          %1033 = vmatpush1.msra.mxu0 0.0
          %1034 = vmatprep.subr.mxu0 0.0
          %1035 = vmatpush1.msra.mxu0 0.0
          %1036 = vmatprep.subr.mxu0 0.0
          %1037 = vmatpush1.msra.mxu0 0.0
          %1038 = vmatprep.subr.mxu0 0.0
          %1039 = vmatpush1.msra.mxu0 0.0
          %1040 = vmatprep.subr.mxu0 0.0
          %1041 = vmatpush1.msra.mxu0 0.0
          %1042 = vmatprep.subr.mxu0 0.0
          %1043 = vmatpush1.msra.mxu0 0.0
          %1044 = vmatprep.subr.mxu0 0.0
          %1045 = vmatpush1.msra.mxu0 0.0
          %1046 = vmatprep.subr.mxu0 0.0
          %1047 = vmatpush1.msra.mxu0 0.0
          %1048 = vmatprep.subr.mxu0 0.0
          %1049 = vmatpush1.msra.mxu0 0.0
          %1050 = vmatprep.subr.mxu0 0.0
          %1051 = vmatpush1.msra.mxu0 0.0
          %1052 = vmatprep.subr.mxu0 0.0
          %1053 = vmatpush1.msra.mxu0 0.0
          %1054 = vmatprep.subr.mxu0 0.0
          %1055 = vmatpush1.msra.mxu0 0.0
          %1056 = vmatprep.subr.mxu0 0.0
          %1057 = vmatpush1.msra.mxu0 0.0
          %1058 = vmatprep.subr.mxu0 0.0
          %1059 = vmatpush1.msra.mxu0 0.0
          %1060 = vmatprep.subr.mxu0 0.0
          %1061 = vmatpush1.msra.mxu0 0.0
          %1062 = vmatprep.subr.mxu0 0.0
          %1063 = vmatpush1.msra.mxu0 0.0
          %1064 = vmatprep.subr.mxu0 0.0
          %1065 = vmatpush1.msra.mxu0 0.0
          %1066 = vmatprep.subr.mxu0 0.0
          %1067 = vmatpush1.msra.mxu0 0.0
          %1068 = vmatprep.subr.mxu0 0.0
          %1069 = vmatpush1.msra.mxu0 0.0
          %1070 = vmatprep.subr.mxu0 0.0
          %1071 = vmatpush1.msra.mxu0 0.0
          %1072 = vmatprep.subr.mxu0 0.0
          %1073 = vmatpush1.msra.mxu0 0.0
          %1074 = vmatprep.subr.mxu0 0.0
          %1075 = vmatpush1.msra.mxu0 0.0
          %1076 = vmatprep.subr.mxu0 0.0
          %1077 = vmatpush1.msra.mxu0 0.0
          %1078 = vmatprep.mubr.f32.mxu0 0.0
          %1079 = vmatmul.mubr.f32.gmra.mrb[0].mxu0 %v1012
          %v1080 = vpop.f32.mrb[0].mxu0
          %v1081 = vadd.f32 0.0, %v1080
          %v1082 = vpop.f32.mrb[0].mxu0
          %1083 = vdwg.mxu0
          %v1084 = vadd.f32 %v1009, %v1081
          %1085 = vst.msk [vmem:[#allocation6] sm:$0xff] %vm657, %v1084
        $region72: #{tpu_custom_call.1} parent=59 // pred_fallthru
          _
        %p1086 = scmp.eq.s32.totalorder %s32, 3
        %p1087 = pnand %p1086, %p542
        %p1088 = pneg %p1087
        // Predicated region
        $region73: #{tpu_custom_call.1} parent=59 // pred_check
          _
        $region74: #{tpu_custom_call.1} parent=59 // pred_check_branch
          %1090 = sbr.rel (%p1087) target = $region76
        $region75: #{tpu_custom_call.1} parent=59 // pred_region
          %v1091 = vld [vmem:[#allocation6] sm:$0xff]
          %v1092 = vld [vmem:[%s9] sm:$0x1]
          %v1094 = vlaneseq
          %v1095 = vshrl.u32 %v1094, 7
          %v1096 = vsub.s32 0, %v1095
          %v1097 = vrot.slane %v1092, %v1096
          %v1099 = vadd.f32 %v1091, %v1097
          %1100 = vst.msk [vmem:[%s498] sm:$0xff] %vm657, %v1099
        $region76: #{tpu_custom_call.1} parent=59 // pred_fallthru
          _
        %s1101 = sand.u32 %s319, 1
        %s1102 = scalar_lea.sflag [#allocation8], %s1101
        %s1103 = sand.u32 %s319, 1
        %s1104 = smul.addr %s1103, 8
        %s1105 = scalar_lea.vmem [#allocation7], %s1104
        // Predicated region
        $region77: #{tpu_custom_call.1} parent=59 // pred_check
          %p1106 = pneg %p329
        $region78: #{tpu_custom_call.1} parent=59 // pred_check_branch
          %1108 = sbr.rel (%p1106) target = $region80
        $region79: #{tpu_custom_call.1} parent=59 // pred_region
          %s1110 = ssub.s32 128, 128
          %1111 = vsyncadd %s1102, %s1110
          %s1112 = sadd.s32 %s31, %s30
          %s1113 = smul.addr %s1112, 128
          %s1114 = scalar_lea.hbm %s10, %s1113
          %s1116 = sshll.u32 %s1105, 4
          %s1117 = int_to_ptr.vmem [resolvable:$true] %s1116
          %1119 = dma.vmem_to_hbm [thread:$0]  %s1117, 128, %s1114, %s1102
        $region80: #{tpu_custom_call.1} parent=59 // pred_fallthru
          _
      $region60: #{tpu_custom_call.1} parent=5 // pred_fallthru
        _
      %p1120 = scmp.le.s32.totalorder 2, %s19
      // Predicated region
      $region81: #{tpu_custom_call.1} parent=5 // pred_check
        %p1121 = pneg %p1120
      $region82: #{tpu_custom_call.1} parent=5 // pred_check_branch
        %1123 = sbr.rel (%p1121) target = $region84
      $region83: #{tpu_custom_call.1} parent=5 // pred_region
        %s1124 = ssub.s32 %s19, 2
        // Predicated region
        $region85: #{tpu_custom_call.1} parent=83 // pred_check
          %p1125 = pneg %p335
        $region86: #{tpu_custom_call.1} parent=83 // pred_check_branch
          %1127 = sbr.rel (%p1125) target = $region88
        $region87: #{tpu_custom_call.1} parent=83 // pred_region
          %s1128 = sand.u32 %s320, 1
          %s1129 = scalar_lea.sflag [#allocation8], %s1128
          %s1130 = sand.u32 %s320, 1
          %s1131 = smul.addr %s1130, 8
          %s1132 = scalar_lea.vmem [#allocation7], %s1131
          %1133 = dma.done %s1129, 128
        $region88: #{tpu_custom_call.1} parent=83 // pred_fallthru
          _
      $region84: #{tpu_custom_call.1} parent=5 // pred_fallthru
        _
    $region6: #{tpu_custom_call.1} parent=1 // loop_footer
      %s23 = sadd.s32 1, %s19
    $region7: #{tpu_custom_call.1} parent=1 // loop_footer_branch
      %18 = sbr.rel target = $region3
    $region8: #{tpu_custom_call.1} parent=1 // loop_exit
      _
    %1134 = vsyncpa [#allocation8], 1
    %s1135 = scalar_lea.sflag [#allocation8], 1
    %1136 = vsyncpa %s1135, 1

</llo_original>
